<compile_context>
chip_gen: v7x
topology: tpu7x:2x2x1
jax: 0.10.0
libtpu: 0.0.40
codegen_flags: <defaults>
</compile_context>

<pallas_src>
import jax
import jax.numpy as jnp
from jax.experimental import pallas as pl
from jax.experimental.pallas import tpu as pltpu  # noqa: F401  (TPU-specific params when scaling up)

# ---- small synthetic BERT config (stands in for bert-base-multilingual-cased) ----
B, S, H = 2, 8, 32          # batch, seq_len, hidden_size
NH, HD = 2, 16              # num_heads, head_dim (NH*HD == H)
I = 64                      # intermediate (FFN) size
N_LAYERS = 2
VOCAB = 128
MAX_POS = 16
NUM_LABELS = 3
LN_EPS = 1e-12
SCALE = 1.0 / (HD ** 0.5)
BS = B * S
G = B * NH                  # attention "groups" = num_heads * batch (g = h*B + b)
VW = 3 * H                  # width of the packed per-layer bias/LN slab rows
LOGIT_PAD = 128             # lane-dense padded logits width


def _layernorm(x, gamma, beta):
    mu = jnp.mean(x, axis=-1, keepdims=True)
    var = jnp.mean((x - mu) ** 2, axis=-1, keepdims=True)
    return (x - mu) * jax.lax.rsqrt(var + LN_EPS) * gamma + beta


def _split_heads(qkv, base):
    # qkv: [BS, 3H]; `base` selects the q/k/v column block.
    # Returns [G, S, HD] with group index g = h*B + b.
    # One lane slice + one leading-dim reshape per head (no 4-D transposes).
    parts = [qkv[:, base + h * HD: base + (h + 1) * HD].reshape(B, S, HD)
             for h in range(NH)]
    return jnp.concatenate(parts, axis=0)


def _merge_heads(ctx):
    # ctx: [G, S, HD] (g = h*B + b) -> [BS, H] with columns ordered h*HD + d.
    return jnp.concatenate(
        [ctx[h * B:(h + 1) * B].reshape(BS, HD) for h in range(NH)], axis=1)


# -------------------- fused Pallas kernel --------------------

def fused_bert_kernel(emb_ref, maskg_ref, embln_ref, wa_ref, w2_ref, vec_ref,
                      cls_ref, out_ref):
    f32, bf16 = jnp.float32, jnp.bfloat16

    x = _layernorm(emb_ref[...], embln_ref[0:1, :], embln_ref[1:2, :])   # [BS, H]
    bias = maskg_ref[...].reshape(G, 1, S)                               # [G, 1, S]

    cls = None
    for l in range(N_LAYERS):                 # static unrolled layer loop
        wa = wa_ref[l]                        # [H, 3H + H + I]  bf16
        w2 = w2_ref[l]                        # [I, H]           bf16
        vecs = vec_ref[l]                     # [8, VW]          f32

        wqkv = wa[:, :3 * H]
        wo = wa[:, 3 * H:4 * H]
        w1 = wa[:, 4 * H:4 * H + I]
        bqkv = vecs[0:1, :3 * H]
        bo, g1, be1 = vecs[1:2, :H], vecs[2:3, :H], vecs[3:4, :H]
        b1 = vecs[4:5, :I]
        b2, g2, be2 = vecs[5:6, :H], vecs[6:7, :H], vecs[7:8, :H]

        # Fused QKV projection (softmax scale pre-folded into the Q columns).
        qkv = jnp.dot(x.astype(bf16), wqkv, preferred_element_type=f32) + bqkv

        qh = _split_heads(qkv, 0).astype(bf16)          # [G, S, HD]
        kh = _split_heads(qkv, H).astype(bf16)
        vh = _split_heads(qkv, 2 * H).astype(bf16)

        sc = jnp.einsum("gqd,gkd->gqk", qh, kh,
                        preferred_element_type=f32) + bias               # [G, S, S]
        sc = sc - jnp.max(sc, axis=-1, keepdims=True)
        p = jnp.exp(sc)
        p = p * pl.reciprocal(jnp.sum(p, axis=-1, keepdims=True), approx=True)
        ctx = jnp.einsum("gqk,gkd->gqd", p.astype(bf16), vh,
                         preferred_element_type=f32)                     # [G, S, HD]
        ctx2 = _merge_heads(ctx)                                         # [BS, H]

        attn = jnp.dot(ctx2.astype(bf16), wo, preferred_element_type=f32) + bo
        x = _layernorm(x + attn, g1, be1)

        if l < N_LAYERS - 1:
            hmid = jax.nn.gelu(
                jnp.dot(x.astype(bf16), w1, preferred_element_type=f32) + b1)
            ffn = jnp.dot(hmid.astype(bf16), w2, preferred_element_type=f32) + b2
            x = _layernorm(x + ffn, g2, be2)
        else:
            # Only the [CLS] rows feed the classifier: skip dead FFN work.
            x_cls = x.reshape(B, S, H)[:, 0, :]                          # [B, H]
            hmid = jax.nn.gelu(
                jnp.dot(x_cls.astype(bf16), w1, preferred_element_type=f32) + b1)
            ffn = jnp.dot(hmid.astype(bf16), w2, preferred_element_type=f32) + b2
            cls = _layernorm(x_cls + ffn, g2, be2)                       # [B, H]

    # dropout(p=0.3) == identity (eval).  Lane-dense padded classifier.
    cw = cls_ref[:H, :]                      # [H, LOGIT_PAD]
    cb = cls_ref[H:H + 1, :]                 # [1, LOGIT_PAD]
    out_ref[...] = jnp.dot(cls, cw, preferred_element_type=f32) + cb


# -------------------- parameter init & forward --------------------

def init_params(key):
    def dense(k, fan_in, fan_out):
        return 0.02 * jax.random.normal(k, (fan_in, fan_out), jnp.float32)
    keys = jax.random.split(key, 4 + 8 * N_LAYERS)
    ki = iter(keys)
    params = {
        "word_emb": 0.02 * jax.random.normal(next(ki), (VOCAB, H), jnp.float32),
        "pos_emb": 0.02 * jax.random.normal(next(ki), (MAX_POS, H), jnp.float32),
        "tok_emb": 0.02 * jax.random.normal(next(ki), (2, H), jnp.float32),
        "emb_ln_g": jnp.ones((1, H), jnp.float32),
        "emb_ln_b": jnp.zeros((1, H), jnp.float32),
        "layers": [],
        "cls_w": dense(next(ki), H, NUM_LABELS),
        "cls_b": jnp.zeros((1, NUM_LABELS), jnp.float32),
    }
    for _ in range(N_LAYERS):
        layer = (
            dense(next(ki), H, H), jnp.zeros((1, H), jnp.float32),   # Wq, bq
            dense(next(ki), H, H), jnp.zeros((1, H), jnp.float32),   # Wk, bk
            dense(next(ki), H, H), jnp.zeros((1, H), jnp.float32),   # Wv, bv
            dense(next(ki), H, H), jnp.zeros((1, H), jnp.float32),   # Wo, bo
            jnp.ones((1, H), jnp.float32), jnp.zeros((1, H), jnp.float32),  # LN1
            dense(next(ki), H, I), jnp.zeros((1, I), jnp.float32),   # W1, b1
            dense(next(ki), I, H), jnp.zeros((1, H), jnp.float32),   # W2, b2
            jnp.ones((1, H), jnp.float32), jnp.zeros((1, H), jnp.float32),  # LN2
        )
        params["layers"].append(layer)
    return params


def bengali_bert_forward(params, input_ids, attention_mask):
    # Embedding gather (glue, plain JAX); everything else runs in one fused kernel.
    emb = (params["word_emb"][input_ids]
           + params["pos_emb"][:S][None, :, :]
           + params["tok_emb"][0][None, None, :])
    emb2 = emb.reshape(BS, H).astype(jnp.float32)

    # Additive mask per group (g = h*B + b), kept 2-D so it occupies one (8,128) tile.
    neg = (1.0 - attention_mask.astype(jnp.float32)) * -10000.0   # [B, S]
    maskg = jnp.tile(neg, (NH, 1))                                # [G, S]

    embln = jnp.concatenate([params["emb_ln_g"], params["emb_ln_b"]], axis=0)  # [2, H]

    def pad_vec(v):
        return jnp.zeros((1, VW), jnp.float32).at[:, :v.shape[1]].set(v)

    wa_rows, w2_rows, vec_rows = [], [], []
    for (wq, bq, wk, bk, wv, bv, wo, bo, g1, be1,
         w1, b1, w2, b2, g2, be2) in params["layers"]:
        wqkv = jnp.concatenate([wq * SCALE, wk, wv], axis=1)     # scale folded into Q
        bqkv = jnp.concatenate([bq * SCALE, bk, bv], axis=1)
        wa_rows.append(jnp.concatenate([wqkv, wo, w1], axis=1))  # [H, 3H+H+I]
        w2_rows.append(w2)                                       # [I, H]
        vec_rows.append(jnp.concatenate(
            [pad_vec(bqkv), pad_vec(bo), pad_vec(g1), pad_vec(be1),
             pad_vec(b1), pad_vec(b2), pad_vec(g2), pad_vec(be2)], axis=0))   # [8, VW]

    wa_slab = jnp.stack(wa_rows, axis=0).astype(jnp.bfloat16)    # [L, H, 3H+H+I] bf16
    w2_slab = jnp.stack(w2_rows, axis=0).astype(jnp.bfloat16)    # [L, I, H]      bf16
    vec_slab = jnp.stack(vec_rows, axis=0)                       # [L, 8, VW]     f32

    # Lane-dense padded classifier: weight rows 0..H-1, bias row H.
    cls_pack = jnp.zeros((H + 1, LOGIT_PAD), jnp.float32)
    cls_pack = cls_pack.at[:H, :NUM_LABELS].set(params["cls_w"])
    cls_pack = cls_pack.at[H:, :NUM_LABELS].set(params["cls_b"])

    logits_pad = pl.pallas_call(
        fused_bert_kernel,
        out_shape=jax.ShapeDtypeStruct((B, LOGIT_PAD), jnp.float32),
    )(emb2, maskg, embln, wa_slab, w2_slab, vec_slab, cls_pack)

    return logits_pad[:, :NUM_LABELS]


# -------------------- pure-JAX reference for validation --------------------

def reference_forward(params, input_ids, attention_mask):
    def ln(x, g, b):
        mu = x.mean(-1, keepdims=True)
        var = ((x - mu) ** 2).mean(-1, keepdims=True)
        return (x - mu) / jnp.sqrt(var + LN_EPS) * g + b

    with jax.default_matmul_precision("float32"):
        x = (params["word_emb"][input_ids]
             + params["pos_emb"][:S][None]
             + params["tok_emb"][0][None, None])
        x = ln(x, params["emb_ln_g"], params["emb_ln_b"])
        mask = attention_mask.astype(jnp.float32)
        bias = (1.0 - mask)[:, None, None, :] * -10000.0
        for (wq, bq, wk, bk, wv, bv, wo, bo, g1, be1,
             w1, b1, w2, b2, g2, be2) in params["layers"]:
            q = (x @ wq + bq).reshape(B, S, NH, HD).transpose(0, 2, 1, 3)
            k = (x @ wk + bk).reshape(B, S, NH, HD).transpose(0, 2, 1, 3)
            v = (x @ wv + bv).reshape(B, S, NH, HD).transpose(0, 2, 1, 3)
            sc = jnp.einsum("bhqd,bhkd->bhqk", q, k) * SCALE + bias
            p = jax.nn.softmax(sc, axis=-1)
            ctx = jnp.einsum("bhqk,bhkd->bhqd", p, v).transpose(0, 2, 1, 3).reshape(B, S, H)
            x = ln(x + ctx @ wo + bo, g1, be1)
            hmid = jax.nn.gelu(x @ w1 + b1)
            x = ln(x + hmid @ w2 + b2, g2, be2)
        return x[:, 0, :] @ params["cls_w"] + params["cls_b"]


if __name__ == "__main__":
    key = jax.random.PRNGKey(0)
    k_par, k_ids = jax.random.split(key)
    params = init_params(k_par)

    input_ids = jax.random.randint(k_ids, (B, S), 0, VOCAB, dtype=jnp.int32)
    attention_mask = jnp.array([[1] * S, [1] * (S - 3) + [0] * 3], dtype=jnp.int32)

    forward = jax.jit(bengali_bert_forward)
    logits = forward(params, input_ids, attention_mask)
    logits = jax.block_until_ready(logits)

    ref = reference_forward(params, input_ids, attention_mask)
    assert logits.shape == (B, NUM_LABELS)
    assert jnp.all(jnp.isfinite(logits))
    # Tolerance reflects bf16 matmul operands (f32 accumulation) vs. the f32 reference.
    assert jnp.allclose(logits, ref, atol=2e-2, rtol=2e-2)

    print("KERNEL_OK")
</pallas_src>

<mosaic_0001>
module attributes {stable_mosaic.version = 11 : i64} {
  func.func @fused_bert_kernel(%arg0: memref<16x32xf32, #tpu.memory_space<vmem>>, %arg1: memref<4x8xf32, #tpu.memory_space<vmem>>, %arg2: memref<2x32xf32, #tpu.memory_space<vmem>>, %arg3: memref<2x32x192xbf16, #tpu.memory_space<vmem>>, %arg4: memref<2x64x32xbf16, #tpu.memory_space<vmem>>, %arg5: memref<2x8x96xf32, #tpu.memory_space<vmem>>, %arg6: memref<33x128xf32, #tpu.memory_space<vmem>>, %arg7: memref<2x128xf32, #tpu.memory_space<vmem>>) attributes {dimension_semantics = [], scalar_prefetch = 0 : i64, scratch_operands = 0 : i64, tpu.core_type = #tpu.core_type<tc>} {
    %c0 = arith.constant 0 : index
    %c0_0 = arith.constant 0 : index
    %0 = vector.load %arg0[%c0, %c0_0] : memref<16x32xf32, #tpu.memory_space<vmem>>, vector<16x32xf32>
    %c0_1 = arith.constant 0 : index
    %c0_2 = arith.constant 0 : index
    %1 = vector.load %arg2[%c0_1, %c0_2] : memref<2x32xf32, #tpu.memory_space<vmem>>, vector<1x32xf32>
    %c1 = arith.constant 1 : index
    %c0_3 = arith.constant 0 : index
    %2 = vector.load %arg2[%c1, %c0_3] : memref<2x32xf32, #tpu.memory_space<vmem>>, vector<1x32xf32>
    %cst = arith.constant dense<0.000000e+00> : vector<16xf32>
    %3 = vector.multi_reduction <add>, %0, %cst [1] : vector<16x32xf32> to vector<16xf32>
    %4 = vector.shape_cast %3 : vector<16xf32> to vector<16x1xf32>
    %cst_4 = arith.constant 3.200000e+01 : f32
    %5 = vector.broadcast %cst_4 : f32 to vector<16x1xf32>
    %6 = arith.divf %4, %5 : vector<16x1xf32>
    %7 = vector.broadcast %6 : vector<16x1xf32> to vector<16x32xf32>
    %8 = arith.subf %0, %7 : vector<16x32xf32>
    %9 = arith.mulf %8, %8 : vector<16x32xf32>
    %cst_5 = arith.constant dense<0.000000e+00> : vector<16xf32>
    %10 = vector.multi_reduction <add>, %9, %cst_5 [1] : vector<16x32xf32> to vector<16xf32>
    %11 = vector.shape_cast %10 : vector<16xf32> to vector<16x1xf32>
    %cst_6 = arith.constant 3.200000e+01 : f32
    %12 = vector.broadcast %cst_6 : f32 to vector<16x1xf32>
    %13 = arith.divf %11, %12 : vector<16x1xf32>
    %14 = vector.broadcast %6 : vector<16x1xf32> to vector<16x32xf32>
    %15 = arith.subf %0, %14 : vector<16x32xf32>
    %cst_7 = arith.constant 9.99999996E-13 : f32
    %16 = vector.broadcast %cst_7 : f32 to vector<16x1xf32>
    %17 = arith.addf %13, %16 : vector<16x1xf32>
    %18 = math.rsqrt %17 : vector<16x1xf32>
    %19 = vector.broadcast %18 : vector<16x1xf32> to vector<16x32xf32>
    %20 = arith.mulf %15, %19 : vector<16x32xf32>
    %21 = vector.broadcast %1 : vector<1x32xf32> to vector<16x32xf32>
    %22 = arith.mulf %20, %21 : vector<16x32xf32>
    %23 = vector.broadcast %2 : vector<1x32xf32> to vector<16x32xf32>
    %24 = arith.addf %22, %23 : vector<16x32xf32>
    %c0_8 = arith.constant 0 : index
    %c0_9 = arith.constant 0 : index
    %25 = vector.load %arg1[%c0_8, %c0_9] : memref<4x8xf32, #tpu.memory_space<vmem>>, vector<4x8xf32>
    %26 = vector.shape_cast %25 : vector<4x8xf32> to vector<4x1x8xf32>
    %c0_10 = arith.constant 0 : index
    %c0_11 = arith.constant 0 : index
    %c0_12 = arith.constant 0 : index
    %27 = vector.load %arg3[%c0_10, %c0_11, %c0_12] : memref<2x32x192xbf16, #tpu.memory_space<vmem>>, vector<1x32x192xbf16>
    %28 = vector.shape_cast %27 : vector<1x32x192xbf16> to vector<32x192xbf16>
    %c0_13 = arith.constant 0 : index
    %c0_14 = arith.constant 0 : index
    %c0_15 = arith.constant 0 : index
    %29 = vector.load %arg4[%c0_13, %c0_14, %c0_15] : memref<2x64x32xbf16, #tpu.memory_space<vmem>>, vector<1x64x32xbf16>
    %30 = vector.shape_cast %29 : vector<1x64x32xbf16> to vector<64x32xbf16>
    %c0_16 = arith.constant 0 : index
    %c0_17 = arith.constant 0 : index
    %c0_18 = arith.constant 0 : index
    %31 = vector.load %arg5[%c0_16, %c0_17, %c0_18] : memref<2x8x96xf32, #tpu.memory_space<vmem>>, vector<1x8x96xf32>
    %32 = vector.shape_cast %31 : vector<1x8x96xf32> to vector<8x96xf32>
    %33 = vector.extract_strided_slice %28 {offsets = [0, 0], sizes = [32, 96], strides = [1, 1]} : vector<32x192xbf16> to vector<32x96xbf16>
    %34 = vector.extract_strided_slice %28 {offsets = [0, 96], sizes = [32, 32], strides = [1, 1]} : vector<32x192xbf16> to vector<32x32xbf16>
    %35 = vector.extract_strided_slice %28 {offsets = [0, 128], sizes = [32, 64], strides = [1, 1]} : vector<32x192xbf16> to vector<32x64xbf16>
    %36 = vector.extract_strided_slice %32 {offsets = [0, 0], sizes = [1, 96], strides = [1, 1]} : vector<8x96xf32> to vector<1x96xf32>
    %37 = vector.extract_strided_slice %32 {offsets = [1, 0], sizes = [1, 32], strides = [1, 1]} : vector<8x96xf32> to vector<1x32xf32>
    %38 = vector.extract_strided_slice %32 {offsets = [2, 0], sizes = [1, 32], strides = [1, 1]} : vector<8x96xf32> to vector<1x32xf32>
    %39 = vector.extract_strided_slice %32 {offsets = [3, 0], sizes = [1, 32], strides = [1, 1]} : vector<8x96xf32> to vector<1x32xf32>
    %40 = vector.extract_strided_slice %32 {offsets = [4, 0], sizes = [1, 64], strides = [1, 1]} : vector<8x96xf32> to vector<1x64xf32>
    %41 = vector.extract_strided_slice %32 {offsets = [5, 0], sizes = [1, 32], strides = [1, 1]} : vector<8x96xf32> to vector<1x32xf32>
    %42 = vector.extract_strided_slice %32 {offsets = [6, 0], sizes = [1, 32], strides = [1, 1]} : vector<8x96xf32> to vector<1x32xf32>
    %43 = vector.extract_strided_slice %32 {offsets = [7, 0], sizes = [1, 32], strides = [1, 1]} : vector<8x96xf32> to vector<1x32xf32>
    %44 = arith.truncf %24 : vector<16x32xf32> to vector<16x32xbf16>
    %cst_19 = arith.constant dense<0.000000e+00> : vector<16x96xf32>
    %45 = tpu.matmul %44, %33, %cst_19 {dimension_numbers = #tpu.dot_dimension_numbers<[1], [0], [0], [1], [0, 0, 1, 1], [], []>} : vector<16x32xbf16>, vector<32x96xbf16>, vector<16x96xf32> -> vector<16x96xf32>
    %46 = vector.broadcast %36 : vector<1x96xf32> to vector<16x96xf32>
    %47 = arith.addf %45, %46 : vector<16x96xf32>
    %48 = vector.extract_strided_slice %47 {offsets = [0, 0], sizes = [16, 16], strides = [1, 1]} : vector<16x96xf32> to vector<16x16xf32>
    %49 = vector.shape_cast %48 : vector<16x16xf32> to vector<2x8x16xf32>
    %50 = vector.extract_strided_slice %47 {offsets = [0, 16], sizes = [16, 16], strides = [1, 1]} : vector<16x96xf32> to vector<16x16xf32>
    %51 = vector.shape_cast %50 : vector<16x16xf32> to vector<2x8x16xf32>
    %52 = tpu.concatenate %49, %51 in 0 : vector<2x8x16xf32>, vector<2x8x16xf32> -> vector<4x8x16xf32>
    %53 = arith.truncf %52 : vector<4x8x16xf32> to vector<4x8x16xbf16>
    %54 = vector.extract_strided_slice %47 {offsets = [0, 32], sizes = [16, 16], strides = [1, 1]} : vector<16x96xf32> to vector<16x16xf32>
    %55 = vector.shape_cast %54 : vector<16x16xf32> to vector<2x8x16xf32>
    %56 = vector.extract_strided_slice %47 {offsets = [0, 48], sizes = [16, 16], strides = [1, 1]} : vector<16x96xf32> to vector<16x16xf32>
    %57 = vector.shape_cast %56 : vector<16x16xf32> to vector<2x8x16xf32>
    %58 = tpu.concatenate %55, %57 in 0 : vector<2x8x16xf32>, vector<2x8x16xf32> -> vector<4x8x16xf32>
    %59 = arith.truncf %58 : vector<4x8x16xf32> to vector<4x8x16xbf16>
    %60 = vector.extract_strided_slice %47 {offsets = [0, 64], sizes = [16, 16], strides = [1, 1]} : vector<16x96xf32> to vector<16x16xf32>
    %61 = vector.shape_cast %60 : vector<16x16xf32> to vector<2x8x16xf32>
    %62 = vector.extract_strided_slice %47 {offsets = [0, 80], sizes = [16, 16], strides = [1, 1]} : vector<16x96xf32> to vector<16x16xf32>
    %63 = vector.shape_cast %62 : vector<16x16xf32> to vector<2x8x16xf32>
    %64 = tpu.concatenate %61, %63 in 0 : vector<2x8x16xf32>, vector<2x8x16xf32> -> vector<4x8x16xf32>
    %65 = arith.truncf %64 : vector<4x8x16xf32> to vector<4x8x16xbf16>
    "tpu.trace_start"() <{level = 10 : i32, message = "gqd,gkd->gqk"}> : () -> ()
    %cst_20 = arith.constant dense<0.000000e+00> : vector<4x8x8xf32>
    %66 = tpu.matmul %53, %59, %cst_20 {dimension_numbers = #tpu.dot_dimension_numbers<[2], [2], [1], [1], [0, 0, 0, 1, 1, 1], [0], [0]>} : vector<4x8x16xbf16>, vector<4x8x16xbf16>, vector<4x8x8xf32> -> vector<4x8x8xf32>
    "tpu.trace_stop"() : () -> ()
    %67 = vector.broadcast %26 : vector<4x1x8xf32> to vector<4x8x8xf32>
    %68 = arith.addf %66, %67 : vector<4x8x8xf32>
    %cst_21 = arith.constant dense<0xFF800000> : vector<4x8xf32>
    %69 = vector.multi_reduction <maximumf>, %68, %cst_21 [2] : vector<4x8x8xf32> to vector<4x8xf32>
    %70 = vector.shape_cast %69 : vector<4x8xf32> to vector<4x8x1xf32>
    %71 = vector.broadcast %70 : vector<4x8x1xf32> to vector<4x8x8xf32>
    %72 = arith.subf %68, %71 : vector<4x8x8xf32>
    %73 = math.exp %72 : vector<4x8x8xf32>
    %cst_22 = arith.constant dense<0.000000e+00> : vector<4x8xf32>
    %74 = vector.multi_reduction <add>, %73, %cst_22 [2] : vector<4x8x8xf32> to vector<4x8xf32>
    %75 = vector.shape_cast %74 : vector<4x8xf32> to vector<4x8x1xf32>
    %76 = tpu.reciprocal %75 {approx = true} : vector<4x8x1xf32> -> vector<4x8x1xf32>
    %77 = vector.broadcast %76 : vector<4x8x1xf32> to vector<4x8x8xf32>
    %78 = arith.mulf %73, %77 : vector<4x8x8xf32>
    %79 = arith.truncf %78 : vector<4x8x8xf32> to vector<4x8x8xbf16>
    "tpu.trace_start"() <{level = 10 : i32, message = "gqk,gkd->gqd"}> : () -> ()
    %cst_23 = arith.constant dense<0.000000e+00> : vector<4x8x16xf32>
    %80 = tpu.matmul %79, %65, %cst_23 {dimension_numbers = #tpu.dot_dimension_numbers<[2], [1], [1], [2], [0, 0, 0, 1, 1, 2], [0], [0]>} : vector<4x8x8xbf16>, vector<4x8x16xbf16>, vector<4x8x16xf32> -> vector<4x8x16xf32>
    "tpu.trace_stop"() : () -> ()
    %81 = vector.extract_strided_slice %80 {offsets = [0, 0, 0], sizes = [2, 8, 16], strides = [1, 1, 1]} : vector<4x8x16xf32> to vector<2x8x16xf32>
    %82 = vector.shape_cast %81 : vector<2x8x16xf32> to vector<16x16xf32>
    %83 = vector.extract_strided_slice %80 {offsets = [2, 0, 0], sizes = [2, 8, 16], strides = [1, 1, 1]} : vector<4x8x16xf32> to vector<2x8x16xf32>
    %84 = vector.shape_cast %83 : vector<2x8x16xf32> to vector<16x16xf32>
    %85 = tpu.concatenate %82, %84 in 1 : vector<16x16xf32>, vector<16x16xf32> -> vector<16x32xf32>
    %86 = arith.truncf %85 : vector<16x32xf32> to vector<16x32xbf16>
    %cst_24 = arith.constant dense<0.000000e+00> : vector<16x32xf32>
    %87 = tpu.matmul %86, %34, %cst_24 {dimension_numbers = #tpu.dot_dimension_numbers<[1], [0], [0], [1], [0, 0, 1, 1], [], []>} : vector<16x32xbf16>, vector<32x32xbf16>, vector<16x32xf32> -> vector<16x32xf32>
    %88 = vector.broadcast %37 : vector<1x32xf32> to vector<16x32xf32>
    %89 = arith.addf %87, %88 : vector<16x32xf32>
    %90 = arith.addf %24, %89 : vector<16x32xf32>
    %cst_25 = arith.constant dense<0.000000e+00> : vector<16xf32>
    %91 = vector.multi_reduction <add>, %90, %cst_25 [1] : vector<16x32xf32> to vector<16xf32>
    %92 = vector.shape_cast %91 : vector<16xf32> to vector<16x1xf32>
    %cst_26 = arith.constant 3.200000e+01 : f32
    %93 = vector.broadcast %cst_26 : f32 to vector<16x1xf32>
    %94 = arith.divf %92, %93 : vector<16x1xf32>
    %95 = vector.broadcast %94 : vector<16x1xf32> to vector<16x32xf32>
    %96 = arith.subf %90, %95 : vector<16x32xf32>
    %97 = arith.mulf %96, %96 : vector<16x32xf32>
    %cst_27 = arith.constant dense<0.000000e+00> : vector<16xf32>
    %98 = vector.multi_reduction <add>, %97, %cst_27 [1] : vector<16x32xf32> to vector<16xf32>
    %99 = vector.shape_cast %98 : vector<16xf32> to vector<16x1xf32>
    %cst_28 = arith.constant 3.200000e+01 : f32
    %100 = vector.broadcast %cst_28 : f32 to vector<16x1xf32>
    %101 = arith.divf %99, %100 : vector<16x1xf32>
    %102 = vector.broadcast %94 : vector<16x1xf32> to vector<16x32xf32>
    %103 = arith.subf %90, %102 : vector<16x32xf32>
    %cst_29 = arith.constant 9.99999996E-13 : f32
    %104 = vector.broadcast %cst_29 : f32 to vector<16x1xf32>
    %105 = arith.addf %101, %104 : vector<16x1xf32>
    %106 = math.rsqrt %105 : vector<16x1xf32>
    %107 = vector.broadcast %106 : vector<16x1xf32> to vector<16x32xf32>
    %108 = arith.mulf %103, %107 : vector<16x32xf32>
    %109 = vector.broadcast %38 : vector<1x32xf32> to vector<16x32xf32>
    %110 = arith.mulf %108, %109 : vector<16x32xf32>
    %111 = vector.broadcast %39 : vector<1x32xf32> to vector<16x32xf32>
    %112 = arith.addf %110, %111 : vector<16x32xf32>
    %113 = arith.truncf %112 : vector<16x32xf32> to vector<16x32xbf16>
    %cst_30 = arith.constant dense<0.000000e+00> : vector<16x64xf32>
    %114 = tpu.matmul %113, %35, %cst_30 {dimension_numbers = #tpu.dot_dimension_numbers<[1], [0], [0], [1], [0, 0, 1, 1], [], []>} : vector<16x32xbf16>, vector<32x64xbf16>, vector<16x64xf32> -> vector<16x64xf32>
    %115 = vector.broadcast %40 : vector<1x64xf32> to vector<16x64xf32>
    %116 = arith.addf %114, %115 : vector<16x64xf32>
    %117 = arith.mulf %116, %116 : vector<16x64xf32>
    %118 = arith.mulf %116, %117 : vector<16x64xf32>
    %cst_31 = arith.constant 4.471500e-02 : f32
    %119 = vector.broadcast %cst_31 : f32 to vector<16x64xf32>
    %120 = arith.mulf %119, %118 : vector<16x64xf32>
    %121 = arith.addf %116, %120 : vector<16x64xf32>
    %cst_32 = arith.constant 0.797884583 : f32
    %122 = vector.broadcast %cst_32 : f32 to vector<16x64xf32>
    %123 = arith.mulf %122, %121 : vector<16x64xf32>
    %124 = math.tanh %123 : vector<16x64xf32>
    %cst_33 = arith.constant 1.000000e+00 : f32
    %125 = vector.broadcast %cst_33 : f32 to vector<16x64xf32>
    %126 = arith.addf %125, %124 : vector<16x64xf32>
    %cst_34 = arith.constant 5.000000e-01 : f32
    %127 = vector.broadcast %cst_34 : f32 to vector<16x64xf32>
    %128 = arith.mulf %127, %126 : vector<16x64xf32>
    %129 = arith.mulf %116, %128 : vector<16x64xf32>
    %130 = arith.truncf %129 : vector<16x64xf32> to vector<16x64xbf16>
    %cst_35 = arith.constant dense<0.000000e+00> : vector<16x32xf32>
    %131 = tpu.matmul %130, %30, %cst_35 {dimension_numbers = #tpu.dot_dimension_numbers<[1], [0], [0], [1], [0, 0, 1, 1], [], []>} : vector<16x64xbf16>, vector<64x32xbf16>, vector<16x32xf32> -> vector<16x32xf32>
    %132 = vector.broadcast %41 : vector<1x32xf32> to vector<16x32xf32>
    %133 = arith.addf %131, %132 : vector<16x32xf32>
    %134 = arith.addf %112, %133 : vector<16x32xf32>
    %cst_36 = arith.constant dense<0.000000e+00> : vector<16xf32>
    %135 = vector.multi_reduction <add>, %134, %cst_36 [1] : vector<16x32xf32> to vector<16xf32>
    %136 = vector.shape_cast %135 : vector<16xf32> to vector<16x1xf32>
    %cst_37 = arith.constant 3.200000e+01 : f32
    %137 = vector.broadcast %cst_37 : f32 to vector<16x1xf32>
    %138 = arith.divf %136, %137 : vector<16x1xf32>
    %139 = vector.broadcast %138 : vector<16x1xf32> to vector<16x32xf32>
    %140 = arith.subf %134, %139 : vector<16x32xf32>
    %141 = arith.mulf %140, %140 : vector<16x32xf32>
    %cst_38 = arith.constant dense<0.000000e+00> : vector<16xf32>
    %142 = vector.multi_reduction <add>, %141, %cst_38 [1] : vector<16x32xf32> to vector<16xf32>
    %143 = vector.shape_cast %142 : vector<16xf32> to vector<16x1xf32>
    %cst_39 = arith.constant 3.200000e+01 : f32
    %144 = vector.broadcast %cst_39 : f32 to vector<16x1xf32>
    %145 = arith.divf %143, %144 : vector<16x1xf32>
    %146 = vector.broadcast %138 : vector<16x1xf32> to vector<16x32xf32>
    %147 = arith.subf %134, %146 : vector<16x32xf32>
    %cst_40 = arith.constant 9.99999996E-13 : f32
    %148 = vector.broadcast %cst_40 : f32 to vector<16x1xf32>
    %149 = arith.addf %145, %148 : vector<16x1xf32>
    %150 = math.rsqrt %149 : vector<16x1xf32>
    %151 = vector.broadcast %150 : vector<16x1xf32> to vector<16x32xf32>
    %152 = arith.mulf %147, %151 : vector<16x32xf32>
    %153 = vector.broadcast %42 : vector<1x32xf32> to vector<16x32xf32>
    %154 = arith.mulf %152, %153 : vector<16x32xf32>
    %155 = vector.broadcast %43 : vector<1x32xf32> to vector<16x32xf32>
    %156 = arith.addf %154, %155 : vector<16x32xf32>
    %c1_41 = arith.constant 1 : index
    %c0_42 = arith.constant 0 : index
    %c0_43 = arith.constant 0 : index
    %157 = vector.load %arg3[%c1_41, %c0_42, %c0_43] : memref<2x32x192xbf16, #tpu.memory_space<vmem>>, vector<1x32x192xbf16>
    %158 = vector.shape_cast %157 : vector<1x32x192xbf16> to vector<32x192xbf16>
    %c1_44 = arith.constant 1 : index
    %c0_45 = arith.constant 0 : index
    %c0_46 = arith.constant 0 : index
    %159 = vector.load %arg4[%c1_44, %c0_45, %c0_46] : memref<2x64x32xbf16, #tpu.memory_space<vmem>>, vector<1x64x32xbf16>
    %160 = vector.shape_cast %159 : vector<1x64x32xbf16> to vector<64x32xbf16>
    %c1_47 = arith.constant 1 : index
    %c0_48 = arith.constant 0 : index
    %c0_49 = arith.constant 0 : index
    %161 = vector.load %arg5[%c1_47, %c0_48, %c0_49] : memref<2x8x96xf32, #tpu.memory_space<vmem>>, vector<1x8x96xf32>
    %162 = vector.shape_cast %161 : vector<1x8x96xf32> to vector<8x96xf32>
    %163 = vector.extract_strided_slice %158 {offsets = [0, 0], sizes = [32, 96], strides = [1, 1]} : vector<32x192xbf16> to vector<32x96xbf16>
    %164 = vector.extract_strided_slice %158 {offsets = [0, 96], sizes = [32, 32], strides = [1, 1]} : vector<32x192xbf16> to vector<32x32xbf16>
    %165 = vector.extract_strided_slice %158 {offsets = [0, 128], sizes = [32, 64], strides = [1, 1]} : vector<32x192xbf16> to vector<32x64xbf16>
    %166 = vector.extract_strided_slice %162 {offsets = [0, 0], sizes = [1, 96], strides = [1, 1]} : vector<8x96xf32> to vector<1x96xf32>
    %167 = vector.extract_strided_slice %162 {offsets = [1, 0], sizes = [1, 32], strides = [1, 1]} : vector<8x96xf32> to vector<1x32xf32>
    %168 = vector.extract_strided_slice %162 {offsets = [2, 0], sizes = [1, 32], strides = [1, 1]} : vector<8x96xf32> to vector<1x32xf32>
    %169 = vector.extract_strided_slice %162 {offsets = [3, 0], sizes = [1, 32], strides = [1, 1]} : vector<8x96xf32> to vector<1x32xf32>
    %170 = vector.extract_strided_slice %162 {offsets = [4, 0], sizes = [1, 64], strides = [1, 1]} : vector<8x96xf32> to vector<1x64xf32>
    %171 = vector.extract_strided_slice %162 {offsets = [5, 0], sizes = [1, 32], strides = [1, 1]} : vector<8x96xf32> to vector<1x32xf32>
    %172 = vector.extract_strided_slice %162 {offsets = [6, 0], sizes = [1, 32], strides = [1, 1]} : vector<8x96xf32> to vector<1x32xf32>
    %173 = vector.extract_strided_slice %162 {offsets = [7, 0], sizes = [1, 32], strides = [1, 1]} : vector<8x96xf32> to vector<1x32xf32>
    %174 = arith.truncf %156 : vector<16x32xf32> to vector<16x32xbf16>
    %cst_50 = arith.constant dense<0.000000e+00> : vector<16x96xf32>
    %175 = tpu.matmul %174, %163, %cst_50 {dimension_numbers = #tpu.dot_dimension_numbers<[1], [0], [0], [1], [0, 0, 1, 1], [], []>} : vector<16x32xbf16>, vector<32x96xbf16>, vector<16x96xf32> -> vector<16x96xf32>
    %176 = vector.broadcast %166 : vector<1x96xf32> to vector<16x96xf32>
    %177 = arith.addf %175, %176 : vector<16x96xf32>
    %178 = vector.extract_strided_slice %177 {offsets = [0, 0], sizes = [16, 16], strides = [1, 1]} : vector<16x96xf32> to vector<16x16xf32>
    %179 = vector.shape_cast %178 : vector<16x16xf32> to vector<2x8x16xf32>
    %180 = vector.extract_strided_slice %177 {offsets = [0, 16], sizes = [16, 16], strides = [1, 1]} : vector<16x96xf32> to vector<16x16xf32>
    %181 = vector.shape_cast %180 : vector<16x16xf32> to vector<2x8x16xf32>
    %182 = tpu.concatenate %179, %181 in 0 : vector<2x8x16xf32>, vector<2x8x16xf32> -> vector<4x8x16xf32>
    %183 = arith.truncf %182 : vector<4x8x16xf32> to vector<4x8x16xbf16>
    %184 = vector.extract_strided_slice %177 {offsets = [0, 32], sizes = [16, 16], strides = [1, 1]} : vector<16x96xf32> to vector<16x16xf32>
    %185 = vector.shape_cast %184 : vector<16x16xf32> to vector<2x8x16xf32>
    %186 = vector.extract_strided_slice %177 {offsets = [0, 48], sizes = [16, 16], strides = [1, 1]} : vector<16x96xf32> to vector<16x16xf32>
    %187 = vector.shape_cast %186 : vector<16x16xf32> to vector<2x8x16xf32>
    %188 = tpu.concatenate %185, %187 in 0 : vector<2x8x16xf32>, vector<2x8x16xf32> -> vector<4x8x16xf32>
    %189 = arith.truncf %188 : vector<4x8x16xf32> to vector<4x8x16xbf16>
    %190 = vector.extract_strided_slice %177 {offsets = [0, 64], sizes = [16, 16], strides = [1, 1]} : vector<16x96xf32> to vector<16x16xf32>
    %191 = vector.shape_cast %190 : vector<16x16xf32> to vector<2x8x16xf32>
    %192 = vector.extract_strided_slice %177 {offsets = [0, 80], sizes = [16, 16], strides = [1, 1]} : vector<16x96xf32> to vector<16x16xf32>
    %193 = vector.shape_cast %192 : vector<16x16xf32> to vector<2x8x16xf32>
    %194 = tpu.concatenate %191, %193 in 0 : vector<2x8x16xf32>, vector<2x8x16xf32> -> vector<4x8x16xf32>
    %195 = arith.truncf %194 : vector<4x8x16xf32> to vector<4x8x16xbf16>
    "tpu.trace_start"() <{level = 10 : i32, message = "gqd,gkd->gqk"}> : () -> ()
    %cst_51 = arith.constant dense<0.000000e+00> : vector<4x8x8xf32>
    %196 = tpu.matmul %183, %189, %cst_51 {dimension_numbers = #tpu.dot_dimension_numbers<[2], [2], [1], [1], [0, 0, 0, 1, 1, 1], [0], [0]>} : vector<4x8x16xbf16>, vector<4x8x16xbf16>, vector<4x8x8xf32> -> vector<4x8x8xf32>
    "tpu.trace_stop"() : () -> ()
    %197 = vector.broadcast %26 : vector<4x1x8xf32> to vector<4x8x8xf32>
    %198 = arith.addf %196, %197 : vector<4x8x8xf32>
    %cst_52 = arith.constant dense<0xFF800000> : vector<4x8xf32>
    %199 = vector.multi_reduction <maximumf>, %198, %cst_52 [2] : vector<4x8x8xf32> to vector<4x8xf32>
    %200 = vector.shape_cast %199 : vector<4x8xf32> to vector<4x8x1xf32>
    %201 = vector.broadcast %200 : vector<4x8x1xf32> to vector<4x8x8xf32>
    %202 = arith.subf %198, %201 : vector<4x8x8xf32>
    %203 = math.exp %202 : vector<4x8x8xf32>
    %cst_53 = arith.constant dense<0.000000e+00> : vector<4x8xf32>
    %204 = vector.multi_reduction <add>, %203, %cst_53 [2] : vector<4x8x8xf32> to vector<4x8xf32>
    %205 = vector.shape_cast %204 : vector<4x8xf32> to vector<4x8x1xf32>
    %206 = tpu.reciprocal %205 {approx = true} : vector<4x8x1xf32> -> vector<4x8x1xf32>
    %207 = vector.broadcast %206 : vector<4x8x1xf32> to vector<4x8x8xf32>
    %208 = arith.mulf %203, %207 : vector<4x8x8xf32>
    %209 = arith.truncf %208 : vector<4x8x8xf32> to vector<4x8x8xbf16>
    "tpu.trace_start"() <{level = 10 : i32, message = "gqk,gkd->gqd"}> : () -> ()
    %cst_54 = arith.constant dense<0.000000e+00> : vector<4x8x16xf32>
    %210 = tpu.matmul %209, %195, %cst_54 {dimension_numbers = #tpu.dot_dimension_numbers<[2], [1], [1], [2], [0, 0, 0, 1, 1, 2], [0], [0]>} : vector<4x8x8xbf16>, vector<4x8x16xbf16>, vector<4x8x16xf32> -> vector<4x8x16xf32>
    "tpu.trace_stop"() : () -> ()
    %211 = vector.extract_strided_slice %210 {offsets = [0, 0, 0], sizes = [2, 8, 16], strides = [1, 1, 1]} : vector<4x8x16xf32> to vector<2x8x16xf32>
    %212 = vector.shape_cast %211 : vector<2x8x16xf32> to vector<16x16xf32>
    %213 = vector.extract_strided_slice %210 {offsets = [2, 0, 0], sizes = [2, 8, 16], strides = [1, 1, 1]} : vector<4x8x16xf32> to vector<2x8x16xf32>
    %214 = vector.shape_cast %213 : vector<2x8x16xf32> to vector<16x16xf32>
    %215 = tpu.concatenate %212, %214 in 1 : vector<16x16xf32>, vector<16x16xf32> -> vector<16x32xf32>
    %216 = arith.truncf %215 : vector<16x32xf32> to vector<16x32xbf16>
    %cst_55 = arith.constant dense<0.000000e+00> : vector<16x32xf32>
    %217 = tpu.matmul %216, %164, %cst_55 {dimension_numbers = #tpu.dot_dimension_numbers<[1], [0], [0], [1], [0, 0, 1, 1], [], []>} : vector<16x32xbf16>, vector<32x32xbf16>, vector<16x32xf32> -> vector<16x32xf32>
    %218 = vector.broadcast %167 : vector<1x32xf32> to vector<16x32xf32>
    %219 = arith.addf %217, %218 : vector<16x32xf32>
    %220 = arith.addf %156, %219 : vector<16x32xf32>
    %cst_56 = arith.constant dense<0.000000e+00> : vector<16xf32>
    %221 = vector.multi_reduction <add>, %220, %cst_56 [1] : vector<16x32xf32> to vector<16xf32>
    %222 = vector.shape_cast %221 : vector<16xf32> to vector<16x1xf32>
    %cst_57 = arith.constant 3.200000e+01 : f32
    %223 = vector.broadcast %cst_57 : f32 to vector<16x1xf32>
    %224 = arith.divf %222, %223 : vector<16x1xf32>
    %225 = vector.broadcast %224 : vector<16x1xf32> to vector<16x32xf32>
    %226 = arith.subf %220, %225 : vector<16x32xf32>
    %227 = arith.mulf %226, %226 : vector<16x32xf32>
    %cst_58 = arith.constant dense<0.000000e+00> : vector<16xf32>
    %228 = vector.multi_reduction <add>, %227, %cst_58 [1] : vector<16x32xf32> to vector<16xf32>
    %229 = vector.shape_cast %228 : vector<16xf32> to vector<16x1xf32>
    %cst_59 = arith.constant 3.200000e+01 : f32
    %230 = vector.broadcast %cst_59 : f32 to vector<16x1xf32>
    %231 = arith.divf %229, %230 : vector<16x1xf32>
    %232 = vector.broadcast %224 : vector<16x1xf32> to vector<16x32xf32>
    %233 = arith.subf %220, %232 : vector<16x32xf32>
    %cst_60 = arith.constant 9.99999996E-13 : f32
    %234 = vector.broadcast %cst_60 : f32 to vector<16x1xf32>
    %235 = arith.addf %231, %234 : vector<16x1xf32>
    %236 = math.rsqrt %235 : vector<16x1xf32>
    %237 = vector.broadcast %236 : vector<16x1xf32> to vector<16x32xf32>
    %238 = arith.mulf %233, %237 : vector<16x32xf32>
    %239 = vector.broadcast %168 : vector<1x32xf32> to vector<16x32xf32>
    %240 = arith.mulf %238, %239 : vector<16x32xf32>
    %241 = vector.broadcast %169 : vector<1x32xf32> to vector<16x32xf32>
    %242 = arith.addf %240, %241 : vector<16x32xf32>
    %243 = vector.shape_cast %242 : vector<16x32xf32> to vector<2x8x32xf32>
    %244 = vector.extract_strided_slice %243 {offsets = [0, 0, 0], sizes = [2, 1, 32], strides = [1, 1, 1]} : vector<2x8x32xf32> to vector<2x1x32xf32>
    %245 = vector.shape_cast %244 : vector<2x1x32xf32> to vector<2x32xf32>
    %246 = arith.truncf %245 : vector<2x32xf32> to vector<2x32xbf16>
    %cst_61 = arith.constant dense<0.000000e+00> : vector<2x64xf32>
    %247 = tpu.matmul %246, %165, %cst_61 {dimension_numbers = #tpu.dot_dimension_numbers<[1], [0], [0], [1], [0, 0, 1, 1], [], []>} : vector<2x32xbf16>, vector<32x64xbf16>, vector<2x64xf32> -> vector<2x64xf32>
    %248 = vector.broadcast %170 : vector<1x64xf32> to vector<2x64xf32>
    %249 = arith.addf %247, %248 : vector<2x64xf32>
    %250 = arith.mulf %249, %249 : vector<2x64xf32>
    %251 = arith.mulf %249, %250 : vector<2x64xf32>
    %cst_62 = arith.constant 4.471500e-02 : f32
    %252 = vector.broadcast %cst_62 : f32 to vector<2x64xf32>
    %253 = arith.mulf %252, %251 : vector<2x64xf32>
    %254 = arith.addf %249, %253 : vector<2x64xf32>
    %cst_63 = arith.constant 0.797884583 : f32
    %255 = vector.broadcast %cst_63 : f32 to vector<2x64xf32>
    %256 = arith.mulf %255, %254 : vector<2x64xf32>
    %257 = math.tanh %256 : vector<2x64xf32>
    %cst_64 = arith.constant 1.000000e+00 : f32
    %258 = vector.broadcast %cst_64 : f32 to vector<2x64xf32>
    %259 = arith.addf %258, %257 : vector<2x64xf32>
    %cst_65 = arith.constant 5.000000e-01 : f32
    %260 = vector.broadcast %cst_65 : f32 to vector<2x64xf32>
    %261 = arith.mulf %260, %259 : vector<2x64xf32>
    %262 = arith.mulf %249, %261 : vector<2x64xf32>
    %263 = arith.truncf %262 : vector<2x64xf32> to vector<2x64xbf16>
    %cst_66 = arith.constant dense<0.000000e+00> : vector<2x32xf32>
    %264 = tpu.matmul %263, %160, %cst_66 {dimension_numbers = #tpu.dot_dimension_numbers<[1], [0], [0], [1], [0, 0, 1, 1], [], []>} : vector<2x64xbf16>, vector<64x32xbf16>, vector<2x32xf32> -> vector<2x32xf32>
    %265 = vector.broadcast %171 : vector<1x32xf32> to vector<2x32xf32>
    %266 = arith.addf %264, %265 : vector<2x32xf32>
    %267 = arith.addf %245, %266 : vector<2x32xf32>
    %cst_67 = arith.constant dense<0.000000e+00> : vector<2xf32>
    %268 = vector.multi_reduction <add>, %267, %cst_67 [1] : vector<2x32xf32> to vector<2xf32>
    %269 = vector.shape_cast %268 : vector<2xf32> to vector<2x1xf32>
    %cst_68 = arith.constant 3.200000e+01 : f32
    %270 = vector.broadcast %cst_68 : f32 to vector<2x1xf32>
    %271 = arith.divf %269, %270 : vector<2x1xf32>
    %272 = vector.broadcast %271 : vector<2x1xf32> to vector<2x32xf32>
    %273 = arith.subf %267, %272 : vector<2x32xf32>
    %274 = arith.mulf %273, %273 : vector<2x32xf32>
    %cst_69 = arith.constant dense<0.000000e+00> : vector<2xf32>
    %275 = vector.multi_reduction <add>, %274, %cst_69 [1] : vector<2x32xf32> to vector<2xf32>
    %276 = vector.shape_cast %275 : vector<2xf32> to vector<2x1xf32>
    %cst_70 = arith.constant 3.200000e+01 : f32
    %277 = vector.broadcast %cst_70 : f32 to vector<2x1xf32>
    %278 = arith.divf %276, %277 : vector<2x1xf32>
    %279 = vector.broadcast %271 : vector<2x1xf32> to vector<2x32xf32>
    %280 = arith.subf %267, %279 : vector<2x32xf32>
    %cst_71 = arith.constant 9.99999996E-13 : f32
    %281 = vector.broadcast %cst_71 : f32 to vector<2x1xf32>
    %282 = arith.addf %278, %281 : vector<2x1xf32>
    %283 = math.rsqrt %282 : vector<2x1xf32>
    %284 = vector.broadcast %283 : vector<2x1xf32> to vector<2x32xf32>
    %285 = arith.mulf %280, %284 : vector<2x32xf32>
    %286 = vector.broadcast %172 : vector<1x32xf32> to vector<2x32xf32>
    %287 = arith.mulf %285, %286 : vector<2x32xf32>
    %288 = vector.broadcast %173 : vector<1x32xf32> to vector<2x32xf32>
    %289 = arith.addf %287, %288 : vector<2x32xf32>
    %c0_72 = arith.constant 0 : index
    %c0_73 = arith.constant 0 : index
    %290 = vector.load %arg6[%c0_72, %c0_73] : memref<33x128xf32, #tpu.memory_space<vmem>>, vector<32x128xf32>
    %c32 = arith.constant 32 : index
    %c0_74 = arith.constant 0 : index
    %291 = vector.load %arg6[%c32, %c0_74] : memref<33x128xf32, #tpu.memory_space<vmem>>, vector<1x128xf32>
    %cst_75 = arith.constant dense<0.000000e+00> : vector<2x128xf32>
    %292 = tpu.matmul %289, %290, %cst_75 {dimension_numbers = #tpu.dot_dimension_numbers<[1], [0], [0], [1], [0, 0, 1, 1], [], []>} : vector<2x32xf32>, vector<32x128xf32>, vector<2x128xf32> -> vector<2x128xf32>
    %293 = vector.broadcast %291 : vector<1x128xf32> to vector<2x128xf32>
    %294 = arith.addf %292, %293 : vector<2x128xf32>
    %c0_76 = arith.constant 0 : index
    %c0_77 = arith.constant 0 : index
    %295 = vector.load %arg7[%c0_76, %c0_77] : memref<2x128xf32, #tpu.memory_space<vmem>>, vector<2x128xf32>
    tpu.vector_store %arg7[%c0_76, %c0_77], %294 {strides = array<i32>} : memref<2x128xf32, #tpu.memory_space<vmem>>, vector<2x128xf32>,
    return
  }
}

</mosaic_0001>

<llo_original>
// kernel: bengali_bert_forward.1
$region0: #{bengali_bert_forward.1}
  #allocation0 [shape = 'u32[]', space=smem, size = 0x4, offset = 0x4, fixed_abs, tag = 'smem constant byte address 0x4 - core index']
  #allocation1 [shape = 'u32[144,128]{1,0:T(1,128)}', space=vmem, size = 0x12000, scoped, tag = 'internal scratch']
  %s0 = inlined_call_operand.vmem [shape: f32[16,32], index: 0, kind: input, shape index: {}]
  %s1 = inlined_call_operand.vmem [shape: f32[4,8], index: 1, kind: input, shape index: {}]
  %s2 = inlined_call_operand.vmem [shape: f32[2,32], index: 2, kind: input, shape index: {}]
  %s3 = inlined_call_operand.vmem [shape: bf16[2,32,192], index: 3, kind: input, shape index: {}]
  %s4 = inlined_call_operand.vmem [shape: bf16[2,64,32], index: 4, kind: input, shape index: {}]
  %s5 = inlined_call_operand.vmem [shape: f32[2,8,96], index: 5, kind: input, shape index: {}]
  %s6 = inlined_call_operand.vmem [shape: f32[33,128], index: 6, kind: input, shape index: {}]
  %s7 = inlined_call_operand.hbm [shape: f32[2,128], index: 7, kind: output, shape index: {}]
  %s8 = sld [smem:[#allocation0]]
  $region38: #{bengali_bert_forward.1} parent=0
    _
  %s10 = ssub.s32 1, %s8
  %s11 = scalar_select 0, %s10, %s8
  $region1: #{bengali_bert_forward.1} parent=0
    #allocation2 [shape = 'u8[1024]{0}', space=vmem, size = 0x400, scoped, tag = 'output window, operand 0, single buffered']
    #allocation3 [shape = 's32[1]{0}', space=sflag, size = 0x4, scoped, tag = 'scoped memory for bengali_bert_forward.1']
    %12 = vsyncpa [#allocation3], 0
    // Predicated region
    $region2: #{bengali_bert_forward.1} parent=1 // pred_check
      _
    $region3: #{bengali_bert_forward.1} parent=1 // pred_check_branch
      %14 = sbr.rel (0) target = $region5
    $region4: #{bengali_bert_forward.1} parent=1 // pred_region
      _
    $region5: #{bengali_bert_forward.1} parent=1 // pred_fallthru
      _
    // Predicated region
    $region6: #{bengali_bert_forward.1} parent=1 // pred_check
      _
    $region7: #{bengali_bert_forward.1} parent=1 // pred_check_branch
      %16 = sbr.rel (0) target = $region9
    $region8: #{bengali_bert_forward.1} parent=1 // pred_region
      _
    $region9: #{bengali_bert_forward.1} parent=1 // pred_fallthru
      _
    // Predicated region
    $region10: #{bengali_bert_forward.1} parent=1 // pred_check
      _
    $region11: #{bengali_bert_forward.1} parent=1 // pred_check_branch
      %18 = sbr.rel (0) target = $region13
    $region12: #{bengali_bert_forward.1} parent=1 // pred_region
      _
    $region13: #{bengali_bert_forward.1} parent=1 // pred_fallthru
      _
    // Predicated region
    $region14: #{bengali_bert_forward.1} parent=1 // pred_check
      _
    $region15: #{bengali_bert_forward.1} parent=1 // pred_check_branch
      %20 = sbr.rel (0) target = $region17
    $region16: #{bengali_bert_forward.1} parent=1 // pred_region
      _
    $region17: #{bengali_bert_forward.1} parent=1 // pred_fallthru
      _
    // Predicated region
    $region18: #{bengali_bert_forward.1} parent=1 // pred_check
      _
    $region19: #{bengali_bert_forward.1} parent=1 // pred_check_branch
      %22 = sbr.rel (0) target = $region21
    $region20: #{bengali_bert_forward.1} parent=1 // pred_region
      _
    $region21: #{bengali_bert_forward.1} parent=1 // pred_fallthru
      _
    // Predicated region
    $region22: #{bengali_bert_forward.1} parent=1 // pred_check
      _
    $region23: #{bengali_bert_forward.1} parent=1 // pred_check_branch
      %24 = sbr.rel (0) target = $region25
    $region24: #{bengali_bert_forward.1} parent=1 // pred_region
      _
    $region25: #{bengali_bert_forward.1} parent=1 // pred_fallthru
      _
    // Predicated region
    $region26: #{bengali_bert_forward.1} parent=1 // pred_check
      _
    $region27: #{bengali_bert_forward.1} parent=1 // pred_check_branch
      %26 = sbr.rel (0) target = $region29
    $region28: #{bengali_bert_forward.1} parent=1 // pred_region
      _
    $region29: #{bengali_bert_forward.1} parent=1 // pred_fallthru
      _
    %v28 = vld [vmem:[%s0] sm:$0xff]
    %v29 = vld [vmem:[%s0 + $0x8] sm:$0xff]
    %v30 = vld [vmem:[%s2] sm:$0x1]
    %v31 = vld [vmem:[%s2 + $0x1] sm:$0x1]
    %vm32 = vcmask 261120
    %v33 = vsel %vm32, %v28, 0.0
    %34 = vadd.xlane.f32.xlu0 %v33
    %v35 = vpop.xlane.xlu0 %34
    %v36 = vsel %vm32, %v29, 0.0
    %37 = vadd.xlane.f32.xlu0 %v36
    %v38 = vpop.xlane.xlu0 %37
    %v39 = vrcp.pop 32.0
    %v40 = vmul.f32 %v35, %v39
    %v41 = vmul.f32 %v38, %v39
    %v42 = vsub.f32 %v28, %v40
    %v43 = vsub.f32 %v29, %v41
    %v44 = vmul.f32 %v42, %v42
    %v45 = vmul.f32 %v43, %v43
    %v46 = vsel %vm32, %v44, 0.0
    %47 = vadd.xlane.f32.xlu0 %v46
    %v48 = vpop.xlane.xlu0 %47
    %v49 = vsel %vm32, %v45, 0.0
    %50 = vadd.xlane.f32.xlu0 %v49
    %v51 = vpop.xlane.xlu0 %50
    %v52 = vmul.f32 %v48, %v39
    %v53 = vmul.f32 %v51, %v39
    %v54 = vadd.f32 %v52, 1e-12
    %v55 = vadd.f32 %v53, 1e-12
    %v56 = vrsqrt.pop %v54
    %v57 = vrsqrt.pop %v55
    %v58 = vmul.f32 %v42, %v56
    %v59 = vmul.f32 %v43, %v57
    %v60 = vlaneseq
    %v61 = vshrl.u32 %v60, 7
    %v62 = vsub.s32 0, %v61
    %v63 = vrot.slane %v30, %v62
    %v64 = vmul.f32 %v58, %v63
    %v65 = vmul.f32 %v59, %v63
    %v66 = vlaneseq
    %v67 = vshrl.u32 %v66, 7
    %v68 = vsub.s32 0, %v67
    %v69 = vrot.slane %v31, %v68
    %v70 = vadd.f32 %v64, %v69
    %v71 = vadd.f32 %v65, %v69
    %v72 = vld [vmem:[%s1] sm:$0xf]
    %v75 = vunpack.c.l.s4 1966171168
    %v76 = vunpack.c.0.s8 %v75
    %v77 = vlaneseq
    %v78 = vshrl.u32 %v77, 7
    %v79 = vsub.s32 %v76, %v78
    %v80 = vrot.slane %v72, %v79
    %v81 = vcombine.high %v80, %v80
    %v83 = vunpack.c.l.s4 1966171168
    %v84 = vunpack.c.0.s8 %v83
    %v85 = vlaneseq
    %v86 = vshrl.u32 %v85, 7
    %v87 = vsub.s32 %v84, %v86
    %v88 = vrot.slane %v80, %v87
    %v90 = vunpack.c.l.s4 1966171168
    %v91 = vunpack.c.0.s8 %v90
    %v92 = vlaneseq
    %v93 = vshrl.u32 %v92, 7
    %v94 = vsub.s32 %v91, %v93
    %v95 = vrot.slane %v81, %v94
    %v96 = vcombine.high %v88, %v88
    %v97 = vcombine.high %v95, %v95
    %v98 = vld [vmem:[%s3] sm:$0xff]
    %v99 = vld [vmem:[%s3 + $0x8] sm:$0xff]
    %v100 = vld [vmem:[%s3 + $0x10] sm:$0xff]
    %v101 = vld [vmem:[%s3 + $0x18] sm:$0xff]
    %v102 = vld [vmem:[%s4] sm:$0xf]
    %v103 = vld [vmem:[%s4 + $0x4] sm:$0xf]
    %v104 = vld [vmem:[%s4 + $0x8] sm:$0xf]
    %v105 = vld [vmem:[%s4 + $0xc] sm:$0xf]
    %v106 = vld [vmem:[%s4 + $0x10] sm:$0xf]
    %v107 = vld [vmem:[%s4 + $0x14] sm:$0xf]
    %v108 = vld [vmem:[%s4 + $0x18] sm:$0xf]
    %v109 = vld [vmem:[%s4 + $0x1c] sm:$0xf]
    %v110 = vld [vmem:[%s5] sm:$0xff]
    %v111 = vpack.c.bf16 %v71, %v70
    %v112 = vlaneseq
    %v113 = vshrl.u32 %v112, 7
    %v114 = vsub.s32 0, %v113
    %v115 = vrot.slane %v110, %v114
    %v120 = vunpack.c.l.b16 %v98
    %v121 = vunpack.c.l.b16 %v99
    %v122 = vunpack.c.l.b16 %v100
    %v123 = vunpack.c.l.b16 %v101
    %v124 = vpack.c.b16 %v121, %v120
    %v125 = vpack.c.b16 %v123, %v122
    %v129 = vsel %vm32, %v111, 0
    %131 = vmatprep.subr.bf16.mxu0 0
    %132 = vmatpush1.bf16.msra.mxu0 %v124
    %133 = vmatprep.subr.bf16.mxu0 0
    %134 = vmatpush1.bf16.msra.mxu0 %v125
    %135 = vmatprep.subr.bf16.mxu0 0
    %136 = vmatpush1.bf16.msra.mxu0 0
    %137 = vmatprep.subr.bf16.mxu0 0
    %138 = vmatpush1.bf16.msra.mxu0 0
    %139 = vmatprep.subr.bf16.mxu0 0
    %140 = vmatpush1.bf16.msra.mxu0 0
    %141 = vmatprep.subr.bf16.mxu0 0
    %142 = vmatpush1.bf16.msra.mxu0 0
    %143 = vmatprep.subr.bf16.mxu0 0
    %144 = vmatpush1.bf16.msra.mxu0 0
    %145 = vmatprep.subr.bf16.mxu0 0
    %146 = vmatpush1.bf16.msra.mxu0 0
    %147 = vmatprep.subr.bf16.mxu0 0
    %148 = vmatpush1.bf16.msra.mxu0 0
    %149 = vmatprep.subr.bf16.mxu0 0
    %150 = vmatpush1.bf16.msra.mxu0 0
    %151 = vmatprep.subr.bf16.mxu0 0
    %152 = vmatpush1.bf16.msra.mxu0 0
    %153 = vmatprep.subr.bf16.mxu0 0
    %154 = vmatpush1.bf16.msra.mxu0 0
    %155 = vmatprep.subr.bf16.mxu0 0
    %156 = vmatpush1.bf16.msra.mxu0 0
    %157 = vmatprep.subr.bf16.mxu0 0
    %158 = vmatpush1.bf16.msra.mxu0 0
    %159 = vmatprep.subr.bf16.mxu0 0
    %160 = vmatpush1.bf16.msra.mxu0 0
    %161 = vmatprep.subr.bf16.mxu0 0
    %162 = vmatpush1.bf16.msra.mxu0 0
    %163 = vmatprep.mubr.bf16.mxu0 0
    %164 = vmatmul.mubr.bf16.gmra.mrb[0].mxu0 %v129
    %v165 = vpop.f32.mrb[0].mxu0
    %v166 = vadd.f32 %v115, %v165
    %v167 = vpop.f32.mrb[0].mxu0
    %v168 = vpop.f32.mrb[0].mxu0
    %v169 = vadd.f32 %v115, %v168
    %v170 = vpop.f32.mrb[0].mxu0
    %171 = vdwg.mxu0
    %174 = vrot.lane.b32.xlu0 %v166, 112
    %v175 = vpop.permute.xlu0 %174
    %176 = vrot.lane.b32.xlu0 %v169, 112
    %v177 = vpop.permute.xlu0 %176
    %v180 = vpack.c.bf16 %v166, %v166
    %v181 = vpack.c.bf16 %v169, %v169
    %v182 = vpack.c.bf16 %v175, %v175
    %v183 = vpack.c.bf16 %v177, %v177
    %v184 = vlaneseq
    %v185 = vshrl.u32 %v184, 7
    %v186 = vsub.s32 0, %v185
    %v187 = vrot.slane %v88, %v186
    %v188 = vlaneseq
    %v189 = vshrl.u32 %v188, 7
    %v190 = vsub.s32 0, %v189
    %v191 = vrot.slane %v95, %v190
    %v192 = vlaneseq
    %v193 = vshrl.u32 %v192, 7
    %v194 = vsub.s32 0, %v193
    %v195 = vrot.slane %v96, %v194
    %v196 = vlaneseq
    %v197 = vshrl.u32 %v196, 7
    %v198 = vsub.s32 0, %v197
    %v199 = vrot.slane %v97, %v198
    %205 = vrot.lane.b32.xlu0 %v180, 96
    %v206 = vpop.permute.xlu0 %205
    %vm207 = vcmask 130048
    %v209 = vsel %vm207, %v180, 0
    %v212 = vsel %vm207, %v206, 0
    %214 = vmatprep.subr.bf16.mxu0 0
    %215 = vmatpush1.bf16.xpose.msra.mxu0 %v212
    %216 = vmatprep.subr.bf16.mxu0 0
    %217 = vmatpush1.bf16.xpose.msra.mxu0 0
    %218 = vmatprep.subr.bf16.mxu0 0
    %219 = vmatpush1.bf16.xpose.msra.mxu0 0
    %220 = vmatprep.subr.bf16.mxu0 0
    %221 = vmatpush1.bf16.xpose.msra.mxu0 0
    %222 = vmatprep.subr.bf16.mxu0 0
    %223 = vmatpush1.bf16.xpose.msra.mxu0 0
    %224 = vmatprep.subr.bf16.mxu0 0
    %225 = vmatpush1.bf16.xpose.msra.mxu0 0
    %226 = vmatprep.subr.bf16.mxu0 0
    %227 = vmatpush1.bf16.xpose.msra.mxu0 0
    %228 = vmatprep.subr.bf16.mxu0 0
    %229 = vmatpush1.bf16.xpose.msra.mxu0 0
    %230 = vmatprep.subr.bf16.mxu0 0
    %231 = vmatpush1.bf16.xpose.msra.mxu0 0
    %232 = vmatprep.subr.bf16.mxu0 0
    %233 = vmatpush1.bf16.xpose.msra.mxu0 0
    %234 = vmatprep.subr.bf16.mxu0 0
    %235 = vmatpush1.bf16.xpose.msra.mxu0 0
    %236 = vmatprep.subr.bf16.mxu0 0
    %237 = vmatpush1.bf16.xpose.msra.mxu0 0
    %238 = vmatprep.subr.bf16.mxu0 0
    %239 = vmatpush1.bf16.xpose.msra.mxu0 0
    %240 = vmatprep.subr.bf16.mxu0 0
    %241 = vmatpush1.bf16.xpose.msra.mxu0 0
    %242 = vmatprep.subr.bf16.mxu0 0
    %243 = vmatpush1.bf16.xpose.msra.mxu0 0
    %244 = vmatprep.subr.bf16.mxu0 0
    %245 = vmatpush1.bf16.xpose.msra.mxu0 0
    %246 = vmatprep.mubr.bf16.mxu0 0
    %247 = vmatmul.mubr.bf16.gmra.mrb[0].mxu0 %v209
    %v248 = vpop.f32.mrb[0].mxu0
    %v249 = vadd.f32 %v187, %v248
    %v250 = vpop.f32.mrb[0].mxu0
    %v251 = vpop.f32.mrb[0].mxu0
    %v252 = vpop.f32.mrb[0].mxu0
    %253 = vdwg.mxu0
    %255 = vrot.lane.b32.xlu0 %v181, 96
    %v256 = vpop.permute.xlu0 %255
    %v258 = vsel %vm207, %v181, 0
    %v261 = vsel %vm207, %v256, 0
    %263 = vmatprep.subr.bf16.mxu0 0
    %264 = vmatpush1.bf16.xpose.msra.mxu0 %v261
    %265 = vmatprep.subr.bf16.mxu0 0
    %266 = vmatpush1.bf16.xpose.msra.mxu0 0
    %267 = vmatprep.subr.bf16.mxu0 0
    %268 = vmatpush1.bf16.xpose.msra.mxu0 0
    %269 = vmatprep.subr.bf16.mxu0 0
    %270 = vmatpush1.bf16.xpose.msra.mxu0 0
    %271 = vmatprep.subr.bf16.mxu0 0
    %272 = vmatpush1.bf16.xpose.msra.mxu0 0
    %273 = vmatprep.subr.bf16.mxu0 0
    %274 = vmatpush1.bf16.xpose.msra.mxu0 0
    %275 = vmatprep.subr.bf16.mxu0 0
    %276 = vmatpush1.bf16.xpose.msra.mxu0 0
    %277 = vmatprep.subr.bf16.mxu0 0
    %278 = vmatpush1.bf16.xpose.msra.mxu0 0
    %279 = vmatprep.subr.bf16.mxu0 0
    %280 = vmatpush1.bf16.xpose.msra.mxu0 0
    %281 = vmatprep.subr.bf16.mxu0 0
    %282 = vmatpush1.bf16.xpose.msra.mxu0 0
    %283 = vmatprep.subr.bf16.mxu0 0
    %284 = vmatpush1.bf16.xpose.msra.mxu0 0
    %285 = vmatprep.subr.bf16.mxu0 0
    %286 = vmatpush1.bf16.xpose.msra.mxu0 0
    %287 = vmatprep.subr.bf16.mxu0 0
    %288 = vmatpush1.bf16.xpose.msra.mxu0 0
    %289 = vmatprep.subr.bf16.mxu0 0
    %290 = vmatpush1.bf16.xpose.msra.mxu0 0
    %291 = vmatprep.subr.bf16.mxu0 0
    %292 = vmatpush1.bf16.xpose.msra.mxu0 0
    %293 = vmatprep.subr.bf16.mxu0 0
    %294 = vmatpush1.bf16.xpose.msra.mxu0 0
    %295 = vmatprep.mubr.bf16.mxu0 0
    %296 = vmatmul.mubr.bf16.gmra.mrb[0].mxu0 %v258
    %v297 = vpop.f32.mrb[0].mxu0
    %v298 = vadd.f32 %v191, %v297
    %v299 = vpop.f32.mrb[0].mxu0
    %v300 = vpop.f32.mrb[0].mxu0
    %v301 = vpop.f32.mrb[0].mxu0
    %302 = vdwg.mxu0
    %304 = vrot.lane.b32.xlu0 %v182, 96
    %v305 = vpop.permute.xlu0 %304
    %v307 = vsel %vm207, %v182, 0
    %v310 = vsel %vm207, %v305, 0
    %312 = vmatprep.subr.bf16.mxu0 0
    %313 = vmatpush1.bf16.xpose.msra.mxu0 %v310
    %314 = vmatprep.subr.bf16.mxu0 0
    %315 = vmatpush1.bf16.xpose.msra.mxu0 0
    %316 = vmatprep.subr.bf16.mxu0 0
    %317 = vmatpush1.bf16.xpose.msra.mxu0 0
    %318 = vmatprep.subr.bf16.mxu0 0
    %319 = vmatpush1.bf16.xpose.msra.mxu0 0
    %320 = vmatprep.subr.bf16.mxu0 0
    %321 = vmatpush1.bf16.xpose.msra.mxu0 0
    %322 = vmatprep.subr.bf16.mxu0 0
    %323 = vmatpush1.bf16.xpose.msra.mxu0 0
    %324 = vmatprep.subr.bf16.mxu0 0
    %325 = vmatpush1.bf16.xpose.msra.mxu0 0
    %326 = vmatprep.subr.bf16.mxu0 0
    %327 = vmatpush1.bf16.xpose.msra.mxu0 0
    %328 = vmatprep.subr.bf16.mxu0 0
    %329 = vmatpush1.bf16.xpose.msra.mxu0 0
    %330 = vmatprep.subr.bf16.mxu0 0
    %331 = vmatpush1.bf16.xpose.msra.mxu0 0
    %332 = vmatprep.subr.bf16.mxu0 0
    %333 = vmatpush1.bf16.xpose.msra.mxu0 0
    %334 = vmatprep.subr.bf16.mxu0 0
    %335 = vmatpush1.bf16.xpose.msra.mxu0 0
    %336 = vmatprep.subr.bf16.mxu0 0
    %337 = vmatpush1.bf16.xpose.msra.mxu0 0
    %338 = vmatprep.subr.bf16.mxu0 0
    %339 = vmatpush1.bf16.xpose.msra.mxu0 0
    %340 = vmatprep.subr.bf16.mxu0 0
    %341 = vmatpush1.bf16.xpose.msra.mxu0 0
    %342 = vmatprep.subr.bf16.mxu0 0
    %343 = vmatpush1.bf16.xpose.msra.mxu0 0
    %344 = vmatprep.mubr.bf16.mxu0 0
    %345 = vmatmul.mubr.bf16.gmra.mrb[0].mxu0 %v307
    %v346 = vpop.f32.mrb[0].mxu0
    %v347 = vadd.f32 %v195, %v346
    %v348 = vpop.f32.mrb[0].mxu0
    %v349 = vpop.f32.mrb[0].mxu0
    %v350 = vpop.f32.mrb[0].mxu0
    %351 = vdwg.mxu0
    %353 = vrot.lane.b32.xlu0 %v183, 96
    %v354 = vpop.permute.xlu0 %353
    %v356 = vsel %vm207, %v183, 0
    %v359 = vsel %vm207, %v354, 0
    %361 = vmatprep.subr.bf16.mxu0 0
    %362 = vmatpush1.bf16.xpose.msra.mxu0 %v359
    %363 = vmatprep.subr.bf16.mxu0 0
    %364 = vmatpush1.bf16.xpose.msra.mxu0 0
    %365 = vmatprep.subr.bf16.mxu0 0
    %366 = vmatpush1.bf16.xpose.msra.mxu0 0
    %367 = vmatprep.subr.bf16.mxu0 0
    %368 = vmatpush1.bf16.xpose.msra.mxu0 0
    %369 = vmatprep.subr.bf16.mxu0 0
    %370 = vmatpush1.bf16.xpose.msra.mxu0 0
    %371 = vmatprep.subr.bf16.mxu0 0
    %372 = vmatpush1.bf16.xpose.msra.mxu0 0
    %373 = vmatprep.subr.bf16.mxu0 0
    %374 = vmatpush1.bf16.xpose.msra.mxu0 0
    %375 = vmatprep.subr.bf16.mxu0 0
    %376 = vmatpush1.bf16.xpose.msra.mxu0 0
    %377 = vmatprep.subr.bf16.mxu0 0
    %378 = vmatpush1.bf16.xpose.msra.mxu0 0
    %379 = vmatprep.subr.bf16.mxu0 0
    %380 = vmatpush1.bf16.xpose.msra.mxu0 0
    %381 = vmatprep.subr.bf16.mxu0 0
    %382 = vmatpush1.bf16.xpose.msra.mxu0 0
    %383 = vmatprep.subr.bf16.mxu0 0
    %384 = vmatpush1.bf16.xpose.msra.mxu0 0
    %385 = vmatprep.subr.bf16.mxu0 0
    %386 = vmatpush1.bf16.xpose.msra.mxu0 0
    %387 = vmatprep.subr.bf16.mxu0 0
    %388 = vmatpush1.bf16.xpose.msra.mxu0 0
    %389 = vmatprep.subr.bf16.mxu0 0
    %390 = vmatpush1.bf16.xpose.msra.mxu0 0
    %391 = vmatprep.subr.bf16.mxu0 0
    %392 = vmatpush1.bf16.xpose.msra.mxu0 0
    %393 = vmatprep.mubr.bf16.mxu0 0
    %394 = vmatmul.mubr.bf16.gmra.mrb[0].mxu0 %v356
    %v395 = vpop.f32.mrb[0].mxu0
    %v396 = vadd.f32 %v199, %v395
    %v397 = vpop.f32.mrb[0].mxu0
    %v398 = vpop.f32.mrb[0].mxu0
    %v399 = vpop.f32.mrb[0].mxu0
    %400 = vdwg.mxu0
    %vm401 = vcmask 64512
    %v402 = vsel %vm401, %v249, -inf
    %403 = vmax.xlane.f32.xlu0 %v402
    %v404 = vpop.xlane.xlu0 %403
    %v405 = vsel %vm401, %v298, -inf
    %406 = vmax.xlane.f32.xlu0 %v405
    %v407 = vpop.xlane.xlu0 %406
    %v408 = vsel %vm401, %v347, -inf
    %409 = vmax.xlane.f32.xlu0 %v408
    %v410 = vpop.xlane.xlu0 %409
    %v411 = vsel %vm401, %v396, -inf
    %412 = vmax.xlane.f32.xlu0 %v411
    %v413 = vpop.xlane.xlu0 %412
    %v414 = vsub.f32 %v249, %v404
    %v415 = vsub.f32 %v298, %v407
    %v416 = vsub.f32 %v347, %v410
    %v417 = vsub.f32 %v396, %v413
    %v418 = vmul.f32 %v414, 1.442695
    %v419 = vpow.pop %v418
    %v420 = vmul.f32 %v415, 1.442695
    %v421 = vpow.pop %v420
    %v422 = vmul.f32 %v416, 1.442695
    %v423 = vpow.pop %v422
    %v424 = vmul.f32 %v417, 1.442695
    %v425 = vpow.pop %v424
    %v426 = vsel %vm401, %v419, 0.0
    %427 = vadd.xlane.f32.xlu0 %v426
    %v428 = vpop.xlane.xlu0 %427
    %v429 = vsel %vm401, %v421, 0.0
    %430 = vadd.xlane.f32.xlu0 %v429
    %v431 = vpop.xlane.xlu0 %430
    %v432 = vsel %vm401, %v423, 0.0
    %433 = vadd.xlane.f32.xlu0 %v432
    %v434 = vpop.xlane.xlu0 %433
    %v435 = vsel %vm401, %v425, 0.0
    %436 = vadd.xlane.f32.xlu0 %v435
    %v437 = vpop.xlane.xlu0 %436
    %v438 = vrcp.pop %v428
    %v439 = vrcp.pop %v431
    %v440 = vrcp.pop %v434
    %v441 = vrcp.pop %v437
    %v442 = vmul.f32 %v419, %v438
    %v443 = vmul.f32 %v421, %v439
    %v444 = vmul.f32 %v423, %v440
    %v445 = vmul.f32 %v425, %v441
    %v446 = vpack.c.bf16 %v442, %v442
    %v447 = vpack.c.bf16 %v443, %v443
    %v448 = vpack.c.bf16 %v444, %v444
    %v449 = vpack.c.bf16 %v445, %v445
    %450 = vrot.lane.b32.xlu0 %v180, 64
    %v451 = vpop.permute.xlu0 %450
    %v453 = vsel %vm401, %v446, 0
    %vm455 = vcmask 1043456
    %v457 = vsel %vm455, %v451, 0
    %459 = vmatprep.subr.bf16.mxu0 0
    %460 = vmatpush1.bf16.msra.mxu0 %v457
    %461 = vmatprep.subr.bf16.mxu0 0
    %462 = vmatpush1.bf16.msra.mxu0 0
    %463 = vmatprep.subr.bf16.mxu0 0
    %464 = vmatpush1.bf16.msra.mxu0 0
    %465 = vmatprep.subr.bf16.mxu0 0
    %466 = vmatpush1.bf16.msra.mxu0 0
    %467 = vmatprep.subr.bf16.mxu0 0
    %468 = vmatpush1.bf16.msra.mxu0 0
    %469 = vmatprep.subr.bf16.mxu0 0
    %470 = vmatpush1.bf16.msra.mxu0 0
    %471 = vmatprep.subr.bf16.mxu0 0
    %472 = vmatpush1.bf16.msra.mxu0 0
    %473 = vmatprep.subr.bf16.mxu0 0
    %474 = vmatpush1.bf16.msra.mxu0 0
    %475 = vmatprep.subr.bf16.mxu0 0
    %476 = vmatpush1.bf16.msra.mxu0 0
    %477 = vmatprep.subr.bf16.mxu0 0
    %478 = vmatpush1.bf16.msra.mxu0 0
    %479 = vmatprep.subr.bf16.mxu0 0
    %480 = vmatpush1.bf16.msra.mxu0 0
    %481 = vmatprep.subr.bf16.mxu0 0
    %482 = vmatpush1.bf16.msra.mxu0 0
    %483 = vmatprep.subr.bf16.mxu0 0
    %484 = vmatpush1.bf16.msra.mxu0 0
    %485 = vmatprep.subr.bf16.mxu0 0
    %486 = vmatpush1.bf16.msra.mxu0 0
    %487 = vmatprep.subr.bf16.mxu0 0
    %488 = vmatpush1.bf16.msra.mxu0 0
    %489 = vmatprep.subr.bf16.mxu0 0
    %490 = vmatpush1.bf16.msra.mxu0 0
    %491 = vmatprep.mubr.bf16.mxu0 0
    %492 = vmatmul.mubr.bf16.gmra.mrb[0].mxu0 %v453
    %v493 = vpop.f32.mrb[0].mxu0
    %v494 = vadd.f32 0.0, %v493
    %v495 = vpop.f32.mrb[0].mxu0
    %v496 = vpop.f32.mrb[0].mxu0
    %v497 = vpop.f32.mrb[0].mxu0
    %498 = vdwg.mxu0
    %499 = vrot.lane.b32.xlu0 %v181, 64
    %v500 = vpop.permute.xlu0 %499
    %v502 = vsel %vm401, %v447, 0
    %v505 = vsel %vm455, %v500, 0
    %507 = vmatprep.subr.bf16.mxu0 0
    %508 = vmatpush1.bf16.msra.mxu0 %v505
    %509 = vmatprep.subr.bf16.mxu0 0
    %510 = vmatpush1.bf16.msra.mxu0 0
    %511 = vmatprep.subr.bf16.mxu0 0
    %512 = vmatpush1.bf16.msra.mxu0 0
    %513 = vmatprep.subr.bf16.mxu0 0
    %514 = vmatpush1.bf16.msra.mxu0 0
    %515 = vmatprep.subr.bf16.mxu0 0
    %516 = vmatpush1.bf16.msra.mxu0 0
    %517 = vmatprep.subr.bf16.mxu0 0
    %518 = vmatpush1.bf16.msra.mxu0 0
    %519 = vmatprep.subr.bf16.mxu0 0
    %520 = vmatpush1.bf16.msra.mxu0 0
    %521 = vmatprep.subr.bf16.mxu0 0
    %522 = vmatpush1.bf16.msra.mxu0 0
    %523 = vmatprep.subr.bf16.mxu0 0
    %524 = vmatpush1.bf16.msra.mxu0 0
    %525 = vmatprep.subr.bf16.mxu0 0
    %526 = vmatpush1.bf16.msra.mxu0 0
    %527 = vmatprep.subr.bf16.mxu0 0
    %528 = vmatpush1.bf16.msra.mxu0 0
    %529 = vmatprep.subr.bf16.mxu0 0
    %530 = vmatpush1.bf16.msra.mxu0 0
    %531 = vmatprep.subr.bf16.mxu0 0
    %532 = vmatpush1.bf16.msra.mxu0 0
    %533 = vmatprep.subr.bf16.mxu0 0
    %534 = vmatpush1.bf16.msra.mxu0 0
    %535 = vmatprep.subr.bf16.mxu0 0
    %536 = vmatpush1.bf16.msra.mxu0 0
    %537 = vmatprep.subr.bf16.mxu0 0
    %538 = vmatpush1.bf16.msra.mxu0 0
    %539 = vmatprep.mubr.bf16.mxu0 0
    %540 = vmatmul.mubr.bf16.gmra.mrb[0].mxu0 %v502
    %v541 = vpop.f32.mrb[0].mxu0
    %v542 = vadd.f32 0.0, %v541
    %v543 = vpop.f32.mrb[0].mxu0
    %v544 = vpop.f32.mrb[0].mxu0
    %v545 = vpop.f32.mrb[0].mxu0
    %546 = vdwg.mxu0
    %547 = vrot.lane.b32.xlu0 %v182, 64
    %v548 = vpop.permute.xlu0 %547
    %v550 = vsel %vm401, %v448, 0
    %v553 = vsel %vm455, %v548, 0
    %555 = vmatprep.subr.bf16.mxu0 0
    %556 = vmatpush1.bf16.msra.mxu0 %v553
    %557 = vmatprep.subr.bf16.mxu0 0
    %558 = vmatpush1.bf16.msra.mxu0 0
    %559 = vmatprep.subr.bf16.mxu0 0
    %560 = vmatpush1.bf16.msra.mxu0 0
    %561 = vmatprep.subr.bf16.mxu0 0
    %562 = vmatpush1.bf16.msra.mxu0 0
    %563 = vmatprep.subr.bf16.mxu0 0
    %564 = vmatpush1.bf16.msra.mxu0 0
    %565 = vmatprep.subr.bf16.mxu0 0
    %566 = vmatpush1.bf16.msra.mxu0 0
    %567 = vmatprep.subr.bf16.mxu0 0
    %568 = vmatpush1.bf16.msra.mxu0 0
    %569 = vmatprep.subr.bf16.mxu0 0
    %570 = vmatpush1.bf16.msra.mxu0 0
    %571 = vmatprep.subr.bf16.mxu0 0
    %572 = vmatpush1.bf16.msra.mxu0 0
    %573 = vmatprep.subr.bf16.mxu0 0
    %574 = vmatpush1.bf16.msra.mxu0 0
    %575 = vmatprep.subr.bf16.mxu0 0
    %576 = vmatpush1.bf16.msra.mxu0 0
    %577 = vmatprep.subr.bf16.mxu0 0
    %578 = vmatpush1.bf16.msra.mxu0 0
    %579 = vmatprep.subr.bf16.mxu0 0
    %580 = vmatpush1.bf16.msra.mxu0 0
    %581 = vmatprep.subr.bf16.mxu0 0
    %582 = vmatpush1.bf16.msra.mxu0 0
    %583 = vmatprep.subr.bf16.mxu0 0
    %584 = vmatpush1.bf16.msra.mxu0 0
    %585 = vmatprep.subr.bf16.mxu0 0
    %586 = vmatpush1.bf16.msra.mxu0 0
    %587 = vmatprep.mubr.bf16.mxu0 0
    %588 = vmatmul.mubr.bf16.gmra.mrb[0].mxu0 %v550
    %v589 = vpop.f32.mrb[0].mxu0
    %v590 = vadd.f32 0.0, %v589
    %v591 = vpop.f32.mrb[0].mxu0
    %v592 = vpop.f32.mrb[0].mxu0
    %v593 = vpop.f32.mrb[0].mxu0
    %594 = vdwg.mxu0
    %595 = vrot.lane.b32.xlu0 %v183, 64
    %v596 = vpop.permute.xlu0 %595
    %v598 = vsel %vm401, %v449, 0
    %v601 = vsel %vm455, %v596, 0
    %603 = vmatprep.subr.bf16.mxu0 0
    %604 = vmatpush1.bf16.msra.mxu0 %v601
    %605 = vmatprep.subr.bf16.mxu0 0
    %606 = vmatpush1.bf16.msra.mxu0 0
    %607 = vmatprep.subr.bf16.mxu0 0
    %608 = vmatpush1.bf16.msra.mxu0 0
    %609 = vmatprep.subr.bf16.mxu0 0
    %610 = vmatpush1.bf16.msra.mxu0 0
    %611 = vmatprep.subr.bf16.mxu0 0
    %612 = vmatpush1.bf16.msra.mxu0 0
    %613 = vmatprep.subr.bf16.mxu0 0
    %614 = vmatpush1.bf16.msra.mxu0 0
    %615 = vmatprep.subr.bf16.mxu0 0
    %616 = vmatpush1.bf16.msra.mxu0 0
    %617 = vmatprep.subr.bf16.mxu0 0
    %618 = vmatpush1.bf16.msra.mxu0 0
    %619 = vmatprep.subr.bf16.mxu0 0
    %620 = vmatpush1.bf16.msra.mxu0 0
    %621 = vmatprep.subr.bf16.mxu0 0
    %622 = vmatpush1.bf16.msra.mxu0 0
    %623 = vmatprep.subr.bf16.mxu0 0
    %624 = vmatpush1.bf16.msra.mxu0 0
    %625 = vmatprep.subr.bf16.mxu0 0
    %626 = vmatpush1.bf16.msra.mxu0 0
    %627 = vmatprep.subr.bf16.mxu0 0
    %628 = vmatpush1.bf16.msra.mxu0 0
    %629 = vmatprep.subr.bf16.mxu0 0
    %630 = vmatpush1.bf16.msra.mxu0 0
    %631 = vmatprep.subr.bf16.mxu0 0
    %632 = vmatpush1.bf16.msra.mxu0 0
    %633 = vmatprep.subr.bf16.mxu0 0
    %634 = vmatpush1.bf16.msra.mxu0 0
    %635 = vmatprep.mubr.bf16.mxu0 0
    %636 = vmatmul.mubr.bf16.gmra.mrb[0].mxu0 %v598
    %v637 = vpop.f32.mrb[0].mxu0
    %v638 = vadd.f32 0.0, %v637
    %v639 = vpop.f32.mrb[0].mxu0
    %v640 = vpop.f32.mrb[0].mxu0
    %v641 = vpop.f32.mrb[0].mxu0
    %642 = vdwg.mxu0
    %645 = vrot.lane.b32.xlu0 %v590, 16
    %v646 = vpop.permute.xlu0 %645
    %647 = vrot.lane.b32.xlu0 %v638, 16
    %v648 = vpop.permute.xlu0 %647
    %v651 = vsel %vm207, %v494, %v646
    %v652 = vsel %vm207, %v542, %v648
    %v653 = vpack.c.bf16 %v652, %v651
    %v654 = vlaneseq
    %v655 = vshrl.u32 %v654, 7
    %v656 = vsub.s32 1, %v655
    %v657 = vrot.slane %v110, %v656
    %658 = vrot.lane.b32.xlu0 %v124, 32
    %v659 = vpop.permute.xlu0 %658
    %660 = vrot.lane.b32.xlu0 %v125, 32
    %v661 = vpop.permute.xlu0 %660
    %v665 = vsel %vm32, %v653, 0
    %667 = vmatprep.subr.bf16.mxu0 0
    %668 = vmatpush1.bf16.msra.mxu0 %v659
    %669 = vmatprep.subr.bf16.mxu0 0
    %670 = vmatpush1.bf16.msra.mxu0 %v661
    %671 = vmatprep.subr.bf16.mxu0 0
    %672 = vmatpush1.bf16.msra.mxu0 0
    %673 = vmatprep.subr.bf16.mxu0 0
    %674 = vmatpush1.bf16.msra.mxu0 0
    %675 = vmatprep.subr.bf16.mxu0 0
    %676 = vmatpush1.bf16.msra.mxu0 0
    %677 = vmatprep.subr.bf16.mxu0 0
    %678 = vmatpush1.bf16.msra.mxu0 0
    %679 = vmatprep.subr.bf16.mxu0 0
    %680 = vmatpush1.bf16.msra.mxu0 0
    %681 = vmatprep.subr.bf16.mxu0 0
    %682 = vmatpush1.bf16.msra.mxu0 0
    %683 = vmatprep.subr.bf16.mxu0 0
    %684 = vmatpush1.bf16.msra.mxu0 0
    %685 = vmatprep.subr.bf16.mxu0 0
    %686 = vmatpush1.bf16.msra.mxu0 0
    %687 = vmatprep.subr.bf16.mxu0 0
    %688 = vmatpush1.bf16.msra.mxu0 0
    %689 = vmatprep.subr.bf16.mxu0 0
    %690 = vmatpush1.bf16.msra.mxu0 0
    %691 = vmatprep.subr.bf16.mxu0 0
    %692 = vmatpush1.bf16.msra.mxu0 0
    %693 = vmatprep.subr.bf16.mxu0 0
    %694 = vmatpush1.bf16.msra.mxu0 0
    %695 = vmatprep.subr.bf16.mxu0 0
    %696 = vmatpush1.bf16.msra.mxu0 0
    %697 = vmatprep.subr.bf16.mxu0 0
    %698 = vmatpush1.bf16.msra.mxu0 0
    %699 = vmatprep.mubr.bf16.mxu0 0
    %700 = vmatmul.mubr.bf16.gmra.mrb[0].mxu0 %v665
    %v701 = vpop.f32.mrb[0].mxu0
    %v702 = vadd.f32 %v657, %v701
    %v703 = vpop.f32.mrb[0].mxu0
    %v704 = vpop.f32.mrb[0].mxu0
    %v705 = vadd.f32 %v657, %v704
    %v706 = vpop.f32.mrb[0].mxu0
    %707 = vdwg.mxu0
    %v708 = vadd.f32 %v70, %v702
    %v709 = vadd.f32 %v71, %v705
    %v710 = vsel %vm32, %v708, 0.0
    %711 = vadd.xlane.f32.xlu0 %v710
    %v712 = vpop.xlane.xlu0 %711
    %v713 = vsel %vm32, %v709, 0.0
    %714 = vadd.xlane.f32.xlu0 %v713
    %v715 = vpop.xlane.xlu0 %714
    %v716 = vmul.f32 %v712, %v39
    %v717 = vmul.f32 %v715, %v39
    %v718 = vsub.f32 %v708, %v716
    %v719 = vsub.f32 %v709, %v717
    %v720 = vmul.f32 %v718, %v718
    %v721 = vmul.f32 %v719, %v719
    %v722 = vsel %vm32, %v720, 0.0
    %723 = vadd.xlane.f32.xlu0 %v722
    %v724 = vpop.xlane.xlu0 %723
    %v725 = vsel %vm32, %v721, 0.0
    %726 = vadd.xlane.f32.xlu0 %v725
    %v727 = vpop.xlane.xlu0 %726
    %v728 = vmul.f32 %v724, %v39
    %v729 = vmul.f32 %v727, %v39
    %v730 = vadd.f32 %v728, 1e-12
    %v731 = vadd.f32 %v729, 1e-12
    %v732 = vrsqrt.pop %v730
    %v733 = vrsqrt.pop %v731
    %v734 = vmul.f32 %v718, %v732
    %v735 = vmul.f32 %v719, %v733
    %v736 = vlaneseq
    %v737 = vshrl.u32 %v736, 7
    %v738 = vsub.s32 2, %v737
    %v739 = vrot.slane %v110, %v738
    %v740 = vmul.f32 %v734, %v739
    %v741 = vmul.f32 %v735, %v739
    %v742 = vlaneseq
    %v743 = vshrl.u32 %v742, 7
    %v744 = vsub.s32 3, %v743
    %v745 = vrot.slane %v110, %v744
    %v746 = vadd.f32 %v740, %v745
    %v747 = vadd.f32 %v741, %v745
    %v748 = vpack.c.bf16 %v747, %v746
    %v749 = vlaneseq
    %v750 = vshrl.u32 %v749, 7
    %v751 = vsub.s32 4, %v750
    %v752 = vrot.slane %v110, %v751
    %v753 = vunpack.c.h.b16 %v98
    %v754 = vunpack.c.h.b16 %v99
    %v755 = vunpack.c.h.b16 %v100
    %v756 = vunpack.c.h.b16 %v101
    %v757 = vpack.c.b16 %v754, %v753
    %v758 = vpack.c.b16 %v756, %v755
    %v762 = vsel %vm32, %v748, 0
    %764 = vmatprep.subr.bf16.mxu0 0
    %765 = vmatpush1.bf16.msra.mxu0 %v757
    %766 = vmatprep.subr.bf16.mxu0 0
    %767 = vmatpush1.bf16.msra.mxu0 %v758
    %768 = vmatprep.subr.bf16.mxu0 0
    %769 = vmatpush1.bf16.msra.mxu0 0
    %770 = vmatprep.subr.bf16.mxu0 0
    %771 = vmatpush1.bf16.msra.mxu0 0
    %772 = vmatprep.subr.bf16.mxu0 0
    %773 = vmatpush1.bf16.msra.mxu0 0
    %774 = vmatprep.subr.bf16.mxu0 0
    %775 = vmatpush1.bf16.msra.mxu0 0
    %776 = vmatprep.subr.bf16.mxu0 0
    %777 = vmatpush1.bf16.msra.mxu0 0
    %778 = vmatprep.subr.bf16.mxu0 0
    %779 = vmatpush1.bf16.msra.mxu0 0
    %780 = vmatprep.subr.bf16.mxu0 0
    %781 = vmatpush1.bf16.msra.mxu0 0
    %782 = vmatprep.subr.bf16.mxu0 0
    %783 = vmatpush1.bf16.msra.mxu0 0
    %784 = vmatprep.subr.bf16.mxu0 0
    %785 = vmatpush1.bf16.msra.mxu0 0
    %786 = vmatprep.subr.bf16.mxu0 0
    %787 = vmatpush1.bf16.msra.mxu0 0
    %788 = vmatprep.subr.bf16.mxu0 0
    %789 = vmatpush1.bf16.msra.mxu0 0
    %790 = vmatprep.subr.bf16.mxu0 0
    %791 = vmatpush1.bf16.msra.mxu0 0
    %792 = vmatprep.subr.bf16.mxu0 0
    %793 = vmatpush1.bf16.msra.mxu0 0
    %794 = vmatprep.subr.bf16.mxu0 0
    %795 = vmatpush1.bf16.msra.mxu0 0
    %796 = vmatprep.mubr.bf16.mxu0 0
    %797 = vmatmul.mubr.bf16.gmra.mrb[0].mxu0 %v762
    %v798 = vpop.f32.mrb[0].mxu0
    %v799 = vadd.f32 %v752, %v798
    %v800 = vpop.f32.mrb[0].mxu0
    %v801 = vpop.f32.mrb[0].mxu0
    %v802 = vadd.f32 %v752, %v801
    %v803 = vpop.f32.mrb[0].mxu0
    %804 = vdwg.mxu0
    %v805 = vmul.f32 %v799, %v799
    %v806 = vmul.f32 %v802, %v802
    %v807 = vmul.f32 %v799, %v805
    %v808 = vmul.f32 %v802, %v806
    %v809 = vmul.f32 %v807, 0.044715
    %v810 = vmul.f32 %v808, 0.044715
    %v811 = vadd.f32 %v799, %v809
    %v812 = vadd.f32 %v802, %v810
    %v813 = vmul.f32 %v811, 0.7978846
    %v814 = vmul.f32 %v812, 0.7978846
    %v815 = vtanh.pop %v813
    %v816 = vtanh.pop %v814
    %v817 = vadd.f32 %v815, 1.0
    %v818 = vadd.f32 %v816, 1.0
    %v819 = vmul.f32 %v817, 0.5
    %v820 = vmul.f32 %v818, 0.5
    %v821 = vmul.f32 %v799, %v819
    %v822 = vmul.f32 %v802, %v820
    %v823 = vpack.c.bf16 %v822, %v821
    %v824 = vlaneseq
    %v825 = vshrl.u32 %v824, 7
    %v826 = vsub.s32 5, %v825
    %v827 = vrot.slane %v110, %v826
    %v836 = vunpack.c.l.b16 %v102
    %v837 = vunpack.c.l.b16 %v103
    %v838 = vunpack.c.l.b16 %v104
    %v839 = vunpack.c.l.b16 %v105
    %v840 = vunpack.c.l.b16 %v106
    %v841 = vunpack.c.l.b16 %v107
    %v842 = vunpack.c.l.b16 %v108
    %v843 = vunpack.c.l.b16 %v109
    %v844 = vpack.c.b16 %v837, %v836
    %v845 = vpack.c.b16 %v839, %v838
    %v846 = vpack.c.b16 %v841, %v840
    %v847 = vpack.c.b16 %v843, %v842
    %vm852 = vcmask 523264
    %v854 = vsel %vm852, %v823, 0
    %856 = vmatprep.subr.bf16.mxu0 0
    %857 = vmatpush1.bf16.msra.mxu0 %v844
    %858 = vmatprep.subr.bf16.mxu0 0
    %859 = vmatpush1.bf16.msra.mxu0 %v845
    %860 = vmatprep.subr.bf16.mxu0 0
    %861 = vmatpush1.bf16.msra.mxu0 %v846
    %862 = vmatprep.subr.bf16.mxu0 0
    %863 = vmatpush1.bf16.msra.mxu0 %v847
    %864 = vmatprep.subr.bf16.mxu0 0
    %865 = vmatpush1.bf16.msra.mxu0 0
    %866 = vmatprep.subr.bf16.mxu0 0
    %867 = vmatpush1.bf16.msra.mxu0 0
    %868 = vmatprep.subr.bf16.mxu0 0
    %869 = vmatpush1.bf16.msra.mxu0 0
    %870 = vmatprep.subr.bf16.mxu0 0
    %871 = vmatpush1.bf16.msra.mxu0 0
    %872 = vmatprep.subr.bf16.mxu0 0
    %873 = vmatpush1.bf16.msra.mxu0 0
    %874 = vmatprep.subr.bf16.mxu0 0
    %875 = vmatpush1.bf16.msra.mxu0 0
    %876 = vmatprep.subr.bf16.mxu0 0
    %877 = vmatpush1.bf16.msra.mxu0 0
    %878 = vmatprep.subr.bf16.mxu0 0
    %879 = vmatpush1.bf16.msra.mxu0 0
    %880 = vmatprep.subr.bf16.mxu0 0
    %881 = vmatpush1.bf16.msra.mxu0 0
    %882 = vmatprep.subr.bf16.mxu0 0
    %883 = vmatpush1.bf16.msra.mxu0 0
    %884 = vmatprep.subr.bf16.mxu0 0
    %885 = vmatpush1.bf16.msra.mxu0 0
    %886 = vmatprep.subr.bf16.mxu0 0
    %887 = vmatpush1.bf16.msra.mxu0 0
    %888 = vmatprep.mubr.bf16.mxu0 0
    %889 = vmatmul.mubr.bf16.gmra.mrb[0].mxu0 %v854
    %v890 = vpop.f32.mrb[0].mxu0
    %v891 = vadd.f32 %v827, %v890
    %v892 = vpop.f32.mrb[0].mxu0
    %v893 = vpop.f32.mrb[0].mxu0
    %v894 = vadd.f32 %v827, %v893
    %v895 = vpop.f32.mrb[0].mxu0
    %896 = vdwg.mxu0
    %v897 = vadd.f32 %v746, %v891
    %v898 = vadd.f32 %v747, %v894
    %v899 = vsel %vm32, %v897, 0.0
    %900 = vadd.xlane.f32.xlu0 %v899
    %v901 = vpop.xlane.xlu0 %900
    %v902 = vsel %vm32, %v898, 0.0
    %903 = vadd.xlane.f32.xlu0 %v902
    %v904 = vpop.xlane.xlu0 %903
    %v905 = vmul.f32 %v901, %v39
    %v906 = vmul.f32 %v904, %v39
    %v907 = vsub.f32 %v897, %v905
    %v908 = vsub.f32 %v898, %v906
    %v909 = vmul.f32 %v907, %v907
    %v910 = vmul.f32 %v908, %v908
    %v911 = vsel %vm32, %v909, 0.0
    %912 = vadd.xlane.f32.xlu0 %v911
    %v913 = vpop.xlane.xlu0 %912
    %v914 = vsel %vm32, %v910, 0.0
    %915 = vadd.xlane.f32.xlu0 %v914
    %v916 = vpop.xlane.xlu0 %915
    %v917 = vmul.f32 %v913, %v39
    %v918 = vmul.f32 %v916, %v39
    %v919 = vadd.f32 %v917, 1e-12
    %v920 = vadd.f32 %v918, 1e-12
    %v921 = vrsqrt.pop %v919
    %v922 = vrsqrt.pop %v920
    %v923 = vmul.f32 %v907, %v921
    %v924 = vmul.f32 %v908, %v922
    %v925 = vlaneseq
    %v926 = vshrl.u32 %v925, 7
    %v927 = vsub.s32 6, %v926
    %v928 = vrot.slane %v110, %v927
    %v929 = vmul.f32 %v923, %v928
    %v930 = vmul.f32 %v924, %v928
    %v931 = vlaneseq
    %v932 = vshrl.u32 %v931, 7
    %v933 = vsub.s32 7, %v932
    %v934 = vrot.slane %v110, %v933
    %v935 = vadd.f32 %v929, %v934
    %v936 = vadd.f32 %v930, %v934
    %s937 = scalar_lea.vmem %s3, 32
    %v938 = vld [vmem:[%s937] sm:$0xff]
    %v939 = vld [vmem:[%s937 + $0x8] sm:$0xff]
    %v940 = vld [vmem:[%s937 + $0x10] sm:$0xff]
    %v941 = vld [vmem:[%s937 + $0x18] sm:$0xff]
    %s942 = scalar_lea.vmem %s4, 32
    %v943 = vld [vmem:[%s942] sm:$0xf]
    %v944 = vld [vmem:[%s942 + $0x4] sm:$0xf]
    %v945 = vld [vmem:[%s942 + $0x8] sm:$0xf]
    %v946 = vld [vmem:[%s942 + $0xc] sm:$0xf]
    %v947 = vld [vmem:[%s942 + $0x10] sm:$0xf]
    %v948 = vld [vmem:[%s942 + $0x14] sm:$0xf]
    %v949 = vld [vmem:[%s942 + $0x18] sm:$0xf]
    %v950 = vld [vmem:[%s942 + $0x1c] sm:$0xf]
    %s951 = scalar_lea.vmem %s5, 8
    %v952 = vld [vmem:[%s951] sm:$0xff]
    %v953 = vpack.c.bf16 %v936, %v935
    %v954 = vlaneseq
    %v955 = vshrl.u32 %v954, 7
    %v956 = vsub.s32 0, %v955
    %v957 = vrot.slane %v952, %v956
    %v962 = vunpack.c.l.b16 %v938
    %v963 = vunpack.c.l.b16 %v939
    %v964 = vunpack.c.l.b16 %v940
    %v965 = vunpack.c.l.b16 %v941
    %v966 = vpack.c.b16 %v963, %v962
    %v967 = vpack.c.b16 %v965, %v964
    %v971 = vsel %vm32, %v953, 0
    %973 = vmatprep.subr.bf16.mxu0 0
    %974 = vmatpush1.bf16.msra.mxu0 %v966
    %975 = vmatprep.subr.bf16.mxu0 0
    %976 = vmatpush1.bf16.msra.mxu0 %v967
    %977 = vmatprep.subr.bf16.mxu0 0
    %978 = vmatpush1.bf16.msra.mxu0 0
    %979 = vmatprep.subr.bf16.mxu0 0
    %980 = vmatpush1.bf16.msra.mxu0 0
    %981 = vmatprep.subr.bf16.mxu0 0
    %982 = vmatpush1.bf16.msra.mxu0 0
    %983 = vmatprep.subr.bf16.mxu0 0
    %984 = vmatpush1.bf16.msra.mxu0 0
    %985 = vmatprep.subr.bf16.mxu0 0
    %986 = vmatpush1.bf16.msra.mxu0 0
    %987 = vmatprep.subr.bf16.mxu0 0
    %988 = vmatpush1.bf16.msra.mxu0 0
    %989 = vmatprep.subr.bf16.mxu0 0
    %990 = vmatpush1.bf16.msra.mxu0 0
    %991 = vmatprep.subr.bf16.mxu0 0
    %992 = vmatpush1.bf16.msra.mxu0 0
    %993 = vmatprep.subr.bf16.mxu0 0
    %994 = vmatpush1.bf16.msra.mxu0 0
    %995 = vmatprep.subr.bf16.mxu0 0
    %996 = vmatpush1.bf16.msra.mxu0 0
    %997 = vmatprep.subr.bf16.mxu0 0
    %998 = vmatpush1.bf16.msra.mxu0 0
    %999 = vmatprep.subr.bf16.mxu0 0
    %1000 = vmatpush1.bf16.msra.mxu0 0
    %1001 = vmatprep.subr.bf16.mxu0 0
    %1002 = vmatpush1.bf16.msra.mxu0 0
    %1003 = vmatprep.subr.bf16.mxu0 0
    %1004 = vmatpush1.bf16.msra.mxu0 0
    %1005 = vmatprep.mubr.bf16.mxu0 0
    %1006 = vmatmul.mubr.bf16.gmra.mrb[0].mxu0 %v971
    %v1007 = vpop.f32.mrb[0].mxu0
    %v1008 = vadd.f32 %v957, %v1007
    %v1009 = vpop.f32.mrb[0].mxu0
    %v1010 = vpop.f32.mrb[0].mxu0
    %v1011 = vadd.f32 %v957, %v1010
    %v1012 = vpop.f32.mrb[0].mxu0
    %1013 = vdwg.mxu0
    %1016 = vrot.lane.b32.xlu0 %v1008, 112
    %v1017 = vpop.permute.xlu0 %1016
    %1018 = vrot.lane.b32.xlu0 %v1011, 112
    %v1019 = vpop.permute.xlu0 %1018
    %v1022 = vpack.c.bf16 %v1008, %v1008
    %v1023 = vpack.c.bf16 %v1011, %v1011
    %v1024 = vpack.c.bf16 %v1017, %v1017
    %v1025 = vpack.c.bf16 %v1019, %v1019
    %1027 = vrot.lane.b32.xlu0 %v1022, 96
    %v1028 = vpop.permute.xlu0 %1027
    %v1030 = vsel %vm207, %v1022, 0
    %v1033 = vsel %vm207, %v1028, 0
    %1035 = vmatprep.subr.bf16.mxu0 0
    %1036 = vmatpush1.bf16.xpose.msra.mxu0 %v1033
    %1037 = vmatprep.subr.bf16.mxu0 0
    %1038 = vmatpush1.bf16.xpose.msra.mxu0 0
    %1039 = vmatprep.subr.bf16.mxu0 0
    %1040 = vmatpush1.bf16.xpose.msra.mxu0 0
    %1041 = vmatprep.subr.bf16.mxu0 0
    %1042 = vmatpush1.bf16.xpose.msra.mxu0 0
    %1043 = vmatprep.subr.bf16.mxu0 0
    %1044 = vmatpush1.bf16.xpose.msra.mxu0 0
    %1045 = vmatprep.subr.bf16.mxu0 0
    %1046 = vmatpush1.bf16.xpose.msra.mxu0 0
    %1047 = vmatprep.subr.bf16.mxu0 0
    %1048 = vmatpush1.bf16.xpose.msra.mxu0 0
    %1049 = vmatprep.subr.bf16.mxu0 0
    %1050 = vmatpush1.bf16.xpose.msra.mxu0 0
    %1051 = vmatprep.subr.bf16.mxu0 0
    %1052 = vmatpush1.bf16.xpose.msra.mxu0 0
    %1053 = vmatprep.subr.bf16.mxu0 0
    %1054 = vmatpush1.bf16.xpose.msra.mxu0 0
    %1055 = vmatprep.subr.bf16.mxu0 0
    %1056 = vmatpush1.bf16.xpose.msra.mxu0 0
    %1057 = vmatprep.subr.bf16.mxu0 0
    %1058 = vmatpush1.bf16.xpose.msra.mxu0 0
    %1059 = vmatprep.subr.bf16.mxu0 0
    %1060 = vmatpush1.bf16.xpose.msra.mxu0 0
    %1061 = vmatprep.subr.bf16.mxu0 0
    %1062 = vmatpush1.bf16.xpose.msra.mxu0 0
    %1063 = vmatprep.subr.bf16.mxu0 0
    %1064 = vmatpush1.bf16.xpose.msra.mxu0 0
    %1065 = vmatprep.subr.bf16.mxu0 0
    %1066 = vmatpush1.bf16.xpose.msra.mxu0 0
    %1067 = vmatprep.mubr.bf16.mxu0 0
    %1068 = vmatmul.mubr.bf16.gmra.mrb[0].mxu0 %v1030
    %v1069 = vpop.f32.mrb[0].mxu0
    %v1070 = vadd.f32 %v187, %v1069
    %v1071 = vpop.f32.mrb[0].mxu0
    %v1072 = vpop.f32.mrb[0].mxu0
    %v1073 = vpop.f32.mrb[0].mxu0
    %1074 = vdwg.mxu0
    %1076 = vrot.lane.b32.xlu0 %v1023, 96
    %v1077 = vpop.permute.xlu0 %1076
    %v1079 = vsel %vm207, %v1023, 0
    %v1082 = vsel %vm207, %v1077, 0
    %1084 = vmatprep.subr.bf16.mxu0 0
    %1085 = vmatpush1.bf16.xpose.msra.mxu0 %v1082
    %1086 = vmatprep.subr.bf16.mxu0 0
    %1087 = vmatpush1.bf16.xpose.msra.mxu0 0
    %1088 = vmatprep.subr.bf16.mxu0 0
    %1089 = vmatpush1.bf16.xpose.msra.mxu0 0
    %1090 = vmatprep.subr.bf16.mxu0 0
    %1091 = vmatpush1.bf16.xpose.msra.mxu0 0
    %1092 = vmatprep.subr.bf16.mxu0 0
    %1093 = vmatpush1.bf16.xpose.msra.mxu0 0
    %1094 = vmatprep.subr.bf16.mxu0 0
    %1095 = vmatpush1.bf16.xpose.msra.mxu0 0
    %1096 = vmatprep.subr.bf16.mxu0 0
    %1097 = vmatpush1.bf16.xpose.msra.mxu0 0
    %1098 = vmatprep.subr.bf16.mxu0 0
    %1099 = vmatpush1.bf16.xpose.msra.mxu0 0
    %1100 = vmatprep.subr.bf16.mxu0 0
    %1101 = vmatpush1.bf16.xpose.msra.mxu0 0
    %1102 = vmatprep.subr.bf16.mxu0 0
    %1103 = vmatpush1.bf16.xpose.msra.mxu0 0
    %1104 = vmatprep.subr.bf16.mxu0 0
    %1105 = vmatpush1.bf16.xpose.msra.mxu0 0
    %1106 = vmatprep.subr.bf16.mxu0 0
    %1107 = vmatpush1.bf16.xpose.msra.mxu0 0
    %1108 = vmatprep.subr.bf16.mxu0 0
    %1109 = vmatpush1.bf16.xpose.msra.mxu0 0
    %1110 = vmatprep.subr.bf16.mxu0 0
    %1111 = vmatpush1.bf16.xpose.msra.mxu0 0
    %1112 = vmatprep.subr.bf16.mxu0 0
    %1113 = vmatpush1.bf16.xpose.msra.mxu0 0
    %1114 = vmatprep.subr.bf16.mxu0 0
    %1115 = vmatpush1.bf16.xpose.msra.mxu0 0
    %1116 = vmatprep.mubr.bf16.mxu0 0
    %1117 = vmatmul.mubr.bf16.gmra.mrb[0].mxu0 %v1079
    %v1118 = vpop.f32.mrb[0].mxu0
    %v1119 = vadd.f32 %v191, %v1118
    %v1120 = vpop.f32.mrb[0].mxu0
    %v1121 = vpop.f32.mrb[0].mxu0
    %v1122 = vpop.f32.mrb[0].mxu0
    %1123 = vdwg.mxu0
    %1125 = vrot.lane.b32.xlu0 %v1024, 96
    %v1126 = vpop.permute.xlu0 %1125
    %v1128 = vsel %vm207, %v1024, 0
    %v1131 = vsel %vm207, %v1126, 0
    %1133 = vmatprep.subr.bf16.mxu0 0
    %1134 = vmatpush1.bf16.xpose.msra.mxu0 %v1131
    %1135 = vmatprep.subr.bf16.mxu0 0
    %1136 = vmatpush1.bf16.xpose.msra.mxu0 0
    %1137 = vmatprep.subr.bf16.mxu0 0
    %1138 = vmatpush1.bf16.xpose.msra.mxu0 0
    %1139 = vmatprep.subr.bf16.mxu0 0
    %1140 = vmatpush1.bf16.xpose.msra.mxu0 0
    %1141 = vmatprep.subr.bf16.mxu0 0
    %1142 = vmatpush1.bf16.xpose.msra.mxu0 0
    %1143 = vmatprep.subr.bf16.mxu0 0
    %1144 = vmatpush1.bf16.xpose.msra.mxu0 0
    %1145 = vmatprep.subr.bf16.mxu0 0
    %1146 = vmatpush1.bf16.xpose.msra.mxu0 0
    %1147 = vmatprep.subr.bf16.mxu0 0
    %1148 = vmatpush1.bf16.xpose.msra.mxu0 0
    %1149 = vmatprep.subr.bf16.mxu0 0
    %1150 = vmatpush1.bf16.xpose.msra.mxu0 0
    %1151 = vmatprep.subr.bf16.mxu0 0
    %1152 = vmatpush1.bf16.xpose.msra.mxu0 0
    %1153 = vmatprep.subr.bf16.mxu0 0
    %1154 = vmatpush1.bf16.xpose.msra.mxu0 0
    %1155 = vmatprep.subr.bf16.mxu0 0
    %1156 = vmatpush1.bf16.xpose.msra.mxu0 0
    %1157 = vmatprep.subr.bf16.mxu0 0
    %1158 = vmatpush1.bf16.xpose.msra.mxu0 0
    %1159 = vmatprep.subr.bf16.mxu0 0
    %1160 = vmatpush1.bf16.xpose.msra.mxu0 0
    %1161 = vmatprep.subr.bf16.mxu0 0
    %1162 = vmatpush1.bf16.xpose.msra.mxu0 0
    %1163 = vmatprep.subr.bf16.mxu0 0
    %1164 = vmatpush1.bf16.xpose.msra.mxu0 0
    %1165 = vmatprep.mubr.bf16.mxu0 0
    %1166 = vmatmul.mubr.bf16.gmra.mrb[0].mxu0 %v1128
    %v1167 = vpop.f32.mrb[0].mxu0
    %v1168 = vadd.f32 %v195, %v1167
    %v1169 = vpop.f32.mrb[0].mxu0
    %v1170 = vpop.f32.mrb[0].mxu0
    %v1171 = vpop.f32.mrb[0].mxu0
    %1172 = vdwg.mxu0
    %1174 = vrot.lane.b32.xlu0 %v1025, 96
    %v1175 = vpop.permute.xlu0 %1174
    %v1177 = vsel %vm207, %v1025, 0
    %v1180 = vsel %vm207, %v1175, 0
    %1182 = vmatprep.subr.bf16.mxu0 0
    %1183 = vmatpush1.bf16.xpose.msra.mxu0 %v1180
    %1184 = vmatprep.subr.bf16.mxu0 0
    %1185 = vmatpush1.bf16.xpose.msra.mxu0 0
    %1186 = vmatprep.subr.bf16.mxu0 0
    %1187 = vmatpush1.bf16.xpose.msra.mxu0 0
    %1188 = vmatprep.subr.bf16.mxu0 0
    %1189 = vmatpush1.bf16.xpose.msra.mxu0 0
    %1190 = vmatprep.subr.bf16.mxu0 0
    %1191 = vmatpush1.bf16.xpose.msra.mxu0 0
    %1192 = vmatprep.subr.bf16.mxu0 0
    %1193 = vmatpush1.bf16.xpose.msra.mxu0 0
    %1194 = vmatprep.subr.bf16.mxu0 0
    %1195 = vmatpush1.bf16.xpose.msra.mxu0 0
    %1196 = vmatprep.subr.bf16.mxu0 0
    %1197 = vmatpush1.bf16.xpose.msra.mxu0 0
    %1198 = vmatprep.subr.bf16.mxu0 0
    %1199 = vmatpush1.bf16.xpose.msra.mxu0 0
    %1200 = vmatprep.subr.bf16.mxu0 0
    %1201 = vmatpush1.bf16.xpose.msra.mxu0 0
    %1202 = vmatprep.subr.bf16.mxu0 0
    %1203 = vmatpush1.bf16.xpose.msra.mxu0 0
    %1204 = vmatprep.subr.bf16.mxu0 0
    %1205 = vmatpush1.bf16.xpose.msra.mxu0 0
    %1206 = vmatprep.subr.bf16.mxu0 0
    %1207 = vmatpush1.bf16.xpose.msra.mxu0 0
    %1208 = vmatprep.subr.bf16.mxu0 0
    %1209 = vmatpush1.bf16.xpose.msra.mxu0 0
    %1210 = vmatprep.subr.bf16.mxu0 0
    %1211 = vmatpush1.bf16.xpose.msra.mxu0 0
    %1212 = vmatprep.subr.bf16.mxu0 0
    %1213 = vmatpush1.bf16.xpose.msra.mxu0 0
    %1214 = vmatprep.mubr.bf16.mxu0 0
    %1215 = vmatmul.mubr.bf16.gmra.mrb[0].mxu0 %v1177
    %v1216 = vpop.f32.mrb[0].mxu0
    %v1217 = vadd.f32 %v199, %v1216
    %v1218 = vpop.f32.mrb[0].mxu0
    %v1219 = vpop.f32.mrb[0].mxu0
    %v1220 = vpop.f32.mrb[0].mxu0
    %1221 = vdwg.mxu0
    %v1222 = vsel %vm401, %v1070, -inf
    %1223 = vmax.xlane.f32.xlu0 %v1222
    %v1224 = vpop.xlane.xlu0 %1223
    %v1225 = vsel %vm401, %v1119, -inf
    %1226 = vmax.xlane.f32.xlu0 %v1225
    %v1227 = vpop.xlane.xlu0 %1226
    %v1228 = vsel %vm401, %v1168, -inf
    %1229 = vmax.xlane.f32.xlu0 %v1228
    %v1230 = vpop.xlane.xlu0 %1229
    %v1231 = vsel %vm401, %v1217, -inf
    %1232 = vmax.xlane.f32.xlu0 %v1231
    %v1233 = vpop.xlane.xlu0 %1232
    %v1234 = vsub.f32 %v1070, %v1224
    %v1235 = vsub.f32 %v1119, %v1227
    %v1236 = vsub.f32 %v1168, %v1230
    %v1237 = vsub.f32 %v1217, %v1233
    %v1238 = vmul.f32 %v1234, 1.442695
    %v1239 = vpow.pop %v1238
    %v1240 = vmul.f32 %v1235, 1.442695
    %v1241 = vpow.pop %v1240
    %v1242 = vmul.f32 %v1236, 1.442695
    %v1243 = vpow.pop %v1242
    %v1244 = vmul.f32 %v1237, 1.442695
    %v1245 = vpow.pop %v1244
    %v1246 = vsel %vm401, %v1239, 0.0
    %1247 = vadd.xlane.f32.xlu0 %v1246
    %v1248 = vpop.xlane.xlu0 %1247
    %v1249 = vsel %vm401, %v1241, 0.0
    %1250 = vadd.xlane.f32.xlu0 %v1249
    %v1251 = vpop.xlane.xlu0 %1250
    %v1252 = vsel %vm401, %v1243, 0.0
    %1253 = vadd.xlane.f32.xlu0 %v1252
    %v1254 = vpop.xlane.xlu0 %1253
    %v1255 = vsel %vm401, %v1245, 0.0
    %1256 = vadd.xlane.f32.xlu0 %v1255
    %v1257 = vpop.xlane.xlu0 %1256
    %v1258 = vrcp.pop %v1248
    %v1259 = vrcp.pop %v1251
    %v1260 = vrcp.pop %v1254
    %v1261 = vrcp.pop %v1257
    %v1262 = vmul.f32 %v1239, %v1258
    %v1263 = vmul.f32 %v1241, %v1259
    %v1264 = vmul.f32 %v1243, %v1260
    %v1265 = vmul.f32 %v1245, %v1261
    %v1266 = vpack.c.bf16 %v1262, %v1262
    %v1267 = vpack.c.bf16 %v1263, %v1263
    %v1268 = vpack.c.bf16 %v1264, %v1264
    %v1269 = vpack.c.bf16 %v1265, %v1265
    %1270 = vrot.lane.b32.xlu0 %v1022, 64
    %v1271 = vpop.permute.xlu0 %1270
    %v1273 = vsel %vm401, %v1266, 0
    %v1276 = vsel %vm455, %v1271, 0
    %1278 = vmatprep.subr.bf16.mxu0 0
    %1279 = vmatpush1.bf16.msra.mxu0 %v1276
    %1280 = vmatprep.subr.bf16.mxu0 0
    %1281 = vmatpush1.bf16.msra.mxu0 0
    %1282 = vmatprep.subr.bf16.mxu0 0
    %1283 = vmatpush1.bf16.msra.mxu0 0
    %1284 = vmatprep.subr.bf16.mxu0 0
    %1285 = vmatpush1.bf16.msra.mxu0 0
    %1286 = vmatprep.subr.bf16.mxu0 0
    %1287 = vmatpush1.bf16.msra.mxu0 0
    %1288 = vmatprep.subr.bf16.mxu0 0
    %1289 = vmatpush1.bf16.msra.mxu0 0
    %1290 = vmatprep.subr.bf16.mxu0 0
    %1291 = vmatpush1.bf16.msra.mxu0 0
    %1292 = vmatprep.subr.bf16.mxu0 0
    %1293 = vmatpush1.bf16.msra.mxu0 0
    %1294 = vmatprep.subr.bf16.mxu0 0
    %1295 = vmatpush1.bf16.msra.mxu0 0
    %1296 = vmatprep.subr.bf16.mxu0 0
    %1297 = vmatpush1.bf16.msra.mxu0 0
    %1298 = vmatprep.subr.bf16.mxu0 0
    %1299 = vmatpush1.bf16.msra.mxu0 0
    %1300 = vmatprep.subr.bf16.mxu0 0
    %1301 = vmatpush1.bf16.msra.mxu0 0
    %1302 = vmatprep.subr.bf16.mxu0 0
    %1303 = vmatpush1.bf16.msra.mxu0 0
    %1304 = vmatprep.subr.bf16.mxu0 0
    %1305 = vmatpush1.bf16.msra.mxu0 0
    %1306 = vmatprep.subr.bf16.mxu0 0
    %1307 = vmatpush1.bf16.msra.mxu0 0
    %1308 = vmatprep.subr.bf16.mxu0 0
    %1309 = vmatpush1.bf16.msra.mxu0 0
    %1310 = vmatprep.mubr.bf16.mxu0 0
    %1311 = vmatmul.mubr.bf16.gmra.mrb[0].mxu0 %v1273
    %v1312 = vpop.f32.mrb[0].mxu0
    %v1313 = vadd.f32 0.0, %v1312
    %v1314 = vpop.f32.mrb[0].mxu0
    %v1315 = vpop.f32.mrb[0].mxu0
    %v1316 = vpop.f32.mrb[0].mxu0
    %1317 = vdwg.mxu0
    %1318 = vrot.lane.b32.xlu0 %v1023, 64
    %v1319 = vpop.permute.xlu0 %1318
    %v1321 = vsel %vm401, %v1267, 0
    %v1324 = vsel %vm455, %v1319, 0
    %1326 = vmatprep.subr.bf16.mxu0 0
    %1327 = vmatpush1.bf16.msra.mxu0 %v1324
    %1328 = vmatprep.subr.bf16.mxu0 0
    %1329 = vmatpush1.bf16.msra.mxu0 0
    %1330 = vmatprep.subr.bf16.mxu0 0
    %1331 = vmatpush1.bf16.msra.mxu0 0
    %1332 = vmatprep.subr.bf16.mxu0 0
    %1333 = vmatpush1.bf16.msra.mxu0 0
    %1334 = vmatprep.subr.bf16.mxu0 0
    %1335 = vmatpush1.bf16.msra.mxu0 0
    %1336 = vmatprep.subr.bf16.mxu0 0
    %1337 = vmatpush1.bf16.msra.mxu0 0
    %1338 = vmatprep.subr.bf16.mxu0 0
    %1339 = vmatpush1.bf16.msra.mxu0 0
    %1340 = vmatprep.subr.bf16.mxu0 0
    %1341 = vmatpush1.bf16.msra.mxu0 0
    %1342 = vmatprep.subr.bf16.mxu0 0
    %1343 = vmatpush1.bf16.msra.mxu0 0
    %1344 = vmatprep.subr.bf16.mxu0 0
    %1345 = vmatpush1.bf16.msra.mxu0 0
    %1346 = vmatprep.subr.bf16.mxu0 0
    %1347 = vmatpush1.bf16.msra.mxu0 0
    %1348 = vmatprep.subr.bf16.mxu0 0
    %1349 = vmatpush1.bf16.msra.mxu0 0
    %1350 = vmatprep.subr.bf16.mxu0 0
    %1351 = vmatpush1.bf16.msra.mxu0 0
    %1352 = vmatprep.subr.bf16.mxu0 0
    %1353 = vmatpush1.bf16.msra.mxu0 0
    %1354 = vmatprep.subr.bf16.mxu0 0
    %1355 = vmatpush1.bf16.msra.mxu0 0
    %1356 = vmatprep.subr.bf16.mxu0 0
    %1357 = vmatpush1.bf16.msra.mxu0 0
    %1358 = vmatprep.mubr.bf16.mxu0 0
    %1359 = vmatmul.mubr.bf16.gmra.mrb[0].mxu0 %v1321
    %v1360 = vpop.f32.mrb[0].mxu0
    %v1361 = vadd.f32 0.0, %v1360
    %v1362 = vpop.f32.mrb[0].mxu0
    %v1363 = vpop.f32.mrb[0].mxu0
    %v1364 = vpop.f32.mrb[0].mxu0
    %1365 = vdwg.mxu0
    %1366 = vrot.lane.b32.xlu0 %v1024, 64
    %v1367 = vpop.permute.xlu0 %1366
    %v1369 = vsel %vm401, %v1268, 0
    %v1372 = vsel %vm455, %v1367, 0
    %1374 = vmatprep.subr.bf16.mxu0 0
    %1375 = vmatpush1.bf16.msra.mxu0 %v1372
    %1376 = vmatprep.subr.bf16.mxu0 0
    %1377 = vmatpush1.bf16.msra.mxu0 0
    %1378 = vmatprep.subr.bf16.mxu0 0
    %1379 = vmatpush1.bf16.msra.mxu0 0
    %1380 = vmatprep.subr.bf16.mxu0 0
    %1381 = vmatpush1.bf16.msra.mxu0 0
    %1382 = vmatprep.subr.bf16.mxu0 0
    %1383 = vmatpush1.bf16.msra.mxu0 0
    %1384 = vmatprep.subr.bf16.mxu0 0
    %1385 = vmatpush1.bf16.msra.mxu0 0
    %1386 = vmatprep.subr.bf16.mxu0 0
    %1387 = vmatpush1.bf16.msra.mxu0 0
    %1388 = vmatprep.subr.bf16.mxu0 0
    %1389 = vmatpush1.bf16.msra.mxu0 0
    %1390 = vmatprep.subr.bf16.mxu0 0
    %1391 = vmatpush1.bf16.msra.mxu0 0
    %1392 = vmatprep.subr.bf16.mxu0 0
    %1393 = vmatpush1.bf16.msra.mxu0 0
    %1394 = vmatprep.subr.bf16.mxu0 0
    %1395 = vmatpush1.bf16.msra.mxu0 0
    %1396 = vmatprep.subr.bf16.mxu0 0
    %1397 = vmatpush1.bf16.msra.mxu0 0
    %1398 = vmatprep.subr.bf16.mxu0 0
    %1399 = vmatpush1.bf16.msra.mxu0 0
    %1400 = vmatprep.subr.bf16.mxu0 0
    %1401 = vmatpush1.bf16.msra.mxu0 0
    %1402 = vmatprep.subr.bf16.mxu0 0
    %1403 = vmatpush1.bf16.msra.mxu0 0
    %1404 = vmatprep.subr.bf16.mxu0 0
    %1405 = vmatpush1.bf16.msra.mxu0 0
    %1406 = vmatprep.mubr.bf16.mxu0 0
    %1407 = vmatmul.mubr.bf16.gmra.mrb[0].mxu0 %v1369
    %v1408 = vpop.f32.mrb[0].mxu0
    %v1409 = vadd.f32 0.0, %v1408
    %v1410 = vpop.f32.mrb[0].mxu0
    %v1411 = vpop.f32.mrb[0].mxu0
    %v1412 = vpop.f32.mrb[0].mxu0
    %1413 = vdwg.mxu0
    %1414 = vrot.lane.b32.xlu0 %v1025, 64
    %v1415 = vpop.permute.xlu0 %1414
    %v1417 = vsel %vm401, %v1269, 0
    %v1420 = vsel %vm455, %v1415, 0
    %1422 = vmatprep.subr.bf16.mxu0 0
    %1423 = vmatpush1.bf16.msra.mxu0 %v1420
    %1424 = vmatprep.subr.bf16.mxu0 0
    %1425 = vmatpush1.bf16.msra.mxu0 0
    %1426 = vmatprep.subr.bf16.mxu0 0
    %1427 = vmatpush1.bf16.msra.mxu0 0
    %1428 = vmatprep.subr.bf16.mxu0 0
    %1429 = vmatpush1.bf16.msra.mxu0 0
    %1430 = vmatprep.subr.bf16.mxu0 0
    %1431 = vmatpush1.bf16.msra.mxu0 0
    %1432 = vmatprep.subr.bf16.mxu0 0
    %1433 = vmatpush1.bf16.msra.mxu0 0
    %1434 = vmatprep.subr.bf16.mxu0 0
    %1435 = vmatpush1.bf16.msra.mxu0 0
    %1436 = vmatprep.subr.bf16.mxu0 0
    %1437 = vmatpush1.bf16.msra.mxu0 0
    %1438 = vmatprep.subr.bf16.mxu0 0
    %1439 = vmatpush1.bf16.msra.mxu0 0
    %1440 = vmatprep.subr.bf16.mxu0 0
    %1441 = vmatpush1.bf16.msra.mxu0 0
    %1442 = vmatprep.subr.bf16.mxu0 0
    %1443 = vmatpush1.bf16.msra.mxu0 0
    %1444 = vmatprep.subr.bf16.mxu0 0
    %1445 = vmatpush1.bf16.msra.mxu0 0
    %1446 = vmatprep.subr.bf16.mxu0 0
    %1447 = vmatpush1.bf16.msra.mxu0 0
    %1448 = vmatprep.subr.bf16.mxu0 0
    %1449 = vmatpush1.bf16.msra.mxu0 0
    %1450 = vmatprep.subr.bf16.mxu0 0
    %1451 = vmatpush1.bf16.msra.mxu0 0
    %1452 = vmatprep.subr.bf16.mxu0 0
    %1453 = vmatpush1.bf16.msra.mxu0 0
    %1454 = vmatprep.mubr.bf16.mxu0 0
    %1455 = vmatmul.mubr.bf16.gmra.mrb[0].mxu0 %v1417
    %v1456 = vpop.f32.mrb[0].mxu0
    %v1457 = vadd.f32 0.0, %v1456
    %v1458 = vpop.f32.mrb[0].mxu0
    %v1459 = vpop.f32.mrb[0].mxu0
    %v1460 = vpop.f32.mrb[0].mxu0
    %1461 = vdwg.mxu0
    %1464 = vrot.lane.b32.xlu0 %v1409, 16
    %v1465 = vpop.permute.xlu0 %1464
    %1466 = vrot.lane.b32.xlu0 %v1457, 16
    %v1467 = vpop.permute.xlu0 %1466
    %v1470 = vsel %vm207, %v1313, %v1465
    %v1471 = vsel %vm207, %v1361, %v1467
    %v1472 = vpack.c.bf16 %v1471, %v1470
    %v1473 = vlaneseq
    %v1474 = vshrl.u32 %v1473, 7
    %v1475 = vsub.s32 1, %v1474
    %v1476 = vrot.slane %v952, %v1475
    %1477 = vrot.lane.b32.xlu0 %v966, 32
    %v1478 = vpop.permute.xlu0 %1477
    %1479 = vrot.lane.b32.xlu0 %v967, 32
    %v1480 = vpop.permute.xlu0 %1479
    %v1484 = vsel %vm32, %v1472, 0
    %1486 = vmatprep.subr.bf16.mxu0 0
    %1487 = vmatpush1.bf16.msra.mxu0 %v1478
    %1488 = vmatprep.subr.bf16.mxu0 0
    %1489 = vmatpush1.bf16.msra.mxu0 %v1480
    %1490 = vmatprep.subr.bf16.mxu0 0
    %1491 = vmatpush1.bf16.msra.mxu0 0
    %1492 = vmatprep.subr.bf16.mxu0 0
    %1493 = vmatpush1.bf16.msra.mxu0 0
    %1494 = vmatprep.subr.bf16.mxu0 0
    %1495 = vmatpush1.bf16.msra.mxu0 0
    %1496 = vmatprep.subr.bf16.mxu0 0
    %1497 = vmatpush1.bf16.msra.mxu0 0
    %1498 = vmatprep.subr.bf16.mxu0 0
    %1499 = vmatpush1.bf16.msra.mxu0 0
    %1500 = vmatprep.subr.bf16.mxu0 0
    %1501 = vmatpush1.bf16.msra.mxu0 0
    %1502 = vmatprep.subr.bf16.mxu0 0
    %1503 = vmatpush1.bf16.msra.mxu0 0
    %1504 = vmatprep.subr.bf16.mxu0 0
    %1505 = vmatpush1.bf16.msra.mxu0 0
    %1506 = vmatprep.subr.bf16.mxu0 0
    %1507 = vmatpush1.bf16.msra.mxu0 0
    %1508 = vmatprep.subr.bf16.mxu0 0
    %1509 = vmatpush1.bf16.msra.mxu0 0
    %1510 = vmatprep.subr.bf16.mxu0 0
    %1511 = vmatpush1.bf16.msra.mxu0 0
    %1512 = vmatprep.subr.bf16.mxu0 0
    %1513 = vmatpush1.bf16.msra.mxu0 0
    %1514 = vmatprep.subr.bf16.mxu0 0
    %1515 = vmatpush1.bf16.msra.mxu0 0
    %1516 = vmatprep.subr.bf16.mxu0 0
    %1517 = vmatpush1.bf16.msra.mxu0 0
    %1518 = vmatprep.mubr.bf16.mxu0 0
    %1519 = vmatmul.mubr.bf16.gmra.mrb[0].mxu0 %v1484
    %v1520 = vpop.f32.mrb[0].mxu0
    %v1521 = vadd.f32 %v1476, %v1520
    %v1522 = vpop.f32.mrb[0].mxu0
    %v1523 = vpop.f32.mrb[0].mxu0
    %v1524 = vadd.f32 %v1476, %v1523
    %v1525 = vpop.f32.mrb[0].mxu0
    %1526 = vdwg.mxu0
    %v1527 = vadd.f32 %v935, %v1521
    %v1528 = vadd.f32 %v936, %v1524
    %v1529 = vsel %vm32, %v1527, 0.0
    %1530 = vadd.xlane.f32.xlu0 %v1529
    %v1531 = vpop.xlane.xlu0 %1530
    %v1532 = vsel %vm32, %v1528, 0.0
    %1533 = vadd.xlane.f32.xlu0 %v1532
    %v1534 = vpop.xlane.xlu0 %1533
    %v1535 = vmul.f32 %v1531, %v39
    %v1536 = vmul.f32 %v1534, %v39
    %v1537 = vsub.f32 %v1527, %v1535
    %v1538 = vsub.f32 %v1528, %v1536
    %v1539 = vmul.f32 %v1537, %v1537
    %v1540 = vmul.f32 %v1538, %v1538
    %v1541 = vsel %vm32, %v1539, 0.0
    %1542 = vadd.xlane.f32.xlu0 %v1541
    %v1543 = vpop.xlane.xlu0 %1542
    %v1544 = vsel %vm32, %v1540, 0.0
    %1545 = vadd.xlane.f32.xlu0 %v1544
    %v1546 = vpop.xlane.xlu0 %1545
    %v1547 = vmul.f32 %v1543, %v39
    %v1548 = vmul.f32 %v1546, %v39
    %v1549 = vadd.f32 %v1547, 1e-12
    %v1550 = vadd.f32 %v1548, 1e-12
    %v1551 = vrsqrt.pop %v1549
    %v1552 = vrsqrt.pop %v1550
    %v1553 = vmul.f32 %v1537, %v1551
    %v1554 = vmul.f32 %v1538, %v1552
    %v1555 = vlaneseq
    %v1556 = vshrl.u32 %v1555, 7
    %v1557 = vsub.s32 2, %v1556
    %v1558 = vrot.slane %v952, %v1557
    %v1559 = vmul.f32 %v1553, %v1558
    %v1560 = vmul.f32 %v1554, %v1558
    %v1561 = vlaneseq
    %v1562 = vshrl.u32 %v1561, 7
    %v1563 = vsub.s32 3, %v1562
    %v1564 = vrot.slane %v952, %v1563
    %v1565 = vadd.f32 %v1559, %v1564
    %v1566 = vadd.f32 %v1560, %v1564
    %v1567 = vpack.c.bf16 %v1565, %v1565
    %v1568 = vpack.c.bf16 %v1566, %v1566
    %v1569 = vlaneseq
    %v1570 = vshrl.u32 %v1569, 7
    %v1571 = vsub.s32 4, %v1570
    %v1572 = vrot.slane %v952, %v1571
    %v1575 = vunpack.c.l.b16 %v1567
    %v1576 = vunpack.c.l.b16 %v1568
    %v1577 = vrot.slane %v1576, 7
    %vm1578 = vcmask 1041409
    %v1579 = vsel %vm1578, %v1577, %v1575
    %v1580 = vpack.c.b16 %v1579, %v1579
    %v1581 = vunpack.c.h.b16 %v938
    %v1582 = vunpack.c.h.b16 %v939
    %v1583 = vunpack.c.h.b16 %v940
    %v1584 = vunpack.c.h.b16 %v941
    %v1585 = vpack.c.b16 %v1582, %v1581
    %v1586 = vpack.c.b16 %v1584, %v1583
    %v1590 = vsel %vm32, %v1580, 0
    %1592 = vmatprep.subr.bf16.mxu0 0
    %1593 = vmatpush1.bf16.msra.mxu0 %v1585
    %1594 = vmatprep.subr.bf16.mxu0 0
    %1595 = vmatpush1.bf16.msra.mxu0 %v1586
    %1596 = vmatprep.subr.bf16.mxu0 0
    %1597 = vmatpush1.bf16.msra.mxu0 0
    %1598 = vmatprep.subr.bf16.mxu0 0
    %1599 = vmatpush1.bf16.msra.mxu0 0
    %1600 = vmatprep.subr.bf16.mxu0 0
    %1601 = vmatpush1.bf16.msra.mxu0 0
    %1602 = vmatprep.subr.bf16.mxu0 0
    %1603 = vmatpush1.bf16.msra.mxu0 0
    %1604 = vmatprep.subr.bf16.mxu0 0
    %1605 = vmatpush1.bf16.msra.mxu0 0
    %1606 = vmatprep.subr.bf16.mxu0 0
    %1607 = vmatpush1.bf16.msra.mxu0 0
    %1608 = vmatprep.subr.bf16.mxu0 0
    %1609 = vmatpush1.bf16.msra.mxu0 0
    %1610 = vmatprep.subr.bf16.mxu0 0
    %1611 = vmatpush1.bf16.msra.mxu0 0
    %1612 = vmatprep.subr.bf16.mxu0 0
    %1613 = vmatpush1.bf16.msra.mxu0 0
    %1614 = vmatprep.subr.bf16.mxu0 0
    %1615 = vmatpush1.bf16.msra.mxu0 0
    %1616 = vmatprep.subr.bf16.mxu0 0
    %1617 = vmatpush1.bf16.msra.mxu0 0
    %1618 = vmatprep.subr.bf16.mxu0 0
    %1619 = vmatpush1.bf16.msra.mxu0 0
    %1620 = vmatprep.subr.bf16.mxu0 0
    %1621 = vmatpush1.bf16.msra.mxu0 0
    %1622 = vmatprep.subr.bf16.mxu0 0
    %1623 = vmatpush1.bf16.msra.mxu0 0
    %1624 = vmatprep.mubr.bf16.mxu0 0
    %1625 = vmatmul.mubr.bf16.gmra.mrb[0].mxu0 %v1590
    %v1626 = vpop.f32.mrb[0].mxu0
    %v1627 = vadd.f32 %v1572, %v1626
    %v1628 = vpop.f32.mrb[0].mxu0
    %v1629 = vpop.f32.mrb[0].mxu0
    %v1630 = vpop.f32.mrb[0].mxu0
    %1631 = vdwg.mxu0
    %v1632 = vmul.f32 %v1627, %v1627
    %v1633 = vmul.f32 %v1627, %v1632
    %v1634 = vmul.f32 %v1633, 0.044715
    %v1635 = vadd.f32 %v1627, %v1634
    %v1636 = vmul.f32 %v1635, 0.7978846
    %v1637 = vtanh.pop %v1636
    %v1638 = vadd.f32 %v1637, 1.0
    %v1639 = vmul.f32 %v1638, 0.5
    %v1640 = vmul.f32 %v1627, %v1639
    %v1641 = vpack.c.bf16 %v1640, %v1640
    %v1642 = vlaneseq
    %v1643 = vshrl.u32 %v1642, 7
    %v1644 = vsub.s32 5, %v1643
    %v1645 = vrot.slane %v952, %v1644
    %v1654 = vunpack.c.l.b16 %v943
    %v1655 = vunpack.c.l.b16 %v944
    %v1656 = vunpack.c.l.b16 %v945
    %v1657 = vunpack.c.l.b16 %v946
    %v1658 = vunpack.c.l.b16 %v947
    %v1659 = vunpack.c.l.b16 %v948
    %v1660 = vunpack.c.l.b16 %v949
    %v1661 = vunpack.c.l.b16 %v950
    %v1662 = vpack.c.b16 %v1655, %v1654
    %v1663 = vpack.c.b16 %v1657, %v1656
    %v1664 = vpack.c.b16 %v1659, %v1658
    %v1665 = vpack.c.b16 %v1661, %v1660
    %v1671 = vsel %vm852, %v1641, 0
    %1673 = vmatprep.subr.bf16.mxu0 0
    %1674 = vmatpush1.bf16.msra.mxu0 %v1662
    %1675 = vmatprep.subr.bf16.mxu0 0
    %1676 = vmatpush1.bf16.msra.mxu0 %v1663
    %1677 = vmatprep.subr.bf16.mxu0 0
    %1678 = vmatpush1.bf16.msra.mxu0 %v1664
    %1679 = vmatprep.subr.bf16.mxu0 0
    %1680 = vmatpush1.bf16.msra.mxu0 %v1665
    %1681 = vmatprep.subr.bf16.mxu0 0
    %1682 = vmatpush1.bf16.msra.mxu0 0
    %1683 = vmatprep.subr.bf16.mxu0 0
    %1684 = vmatpush1.bf16.msra.mxu0 0
    %1685 = vmatprep.subr.bf16.mxu0 0
    %1686 = vmatpush1.bf16.msra.mxu0 0
    %1687 = vmatprep.subr.bf16.mxu0 0
    %1688 = vmatpush1.bf16.msra.mxu0 0
    %1689 = vmatprep.subr.bf16.mxu0 0
    %1690 = vmatpush1.bf16.msra.mxu0 0
    %1691 = vmatprep.subr.bf16.mxu0 0
    %1692 = vmatpush1.bf16.msra.mxu0 0
    %1693 = vmatprep.subr.bf16.mxu0 0
    %1694 = vmatpush1.bf16.msra.mxu0 0
    %1695 = vmatprep.subr.bf16.mxu0 0
    %1696 = vmatpush1.bf16.msra.mxu0 0
    %1697 = vmatprep.subr.bf16.mxu0 0
    %1698 = vmatpush1.bf16.msra.mxu0 0
    %1699 = vmatprep.subr.bf16.mxu0 0
    %1700 = vmatpush1.bf16.msra.mxu0 0
    %1701 = vmatprep.subr.bf16.mxu0 0
    %1702 = vmatpush1.bf16.msra.mxu0 0
    %1703 = vmatprep.subr.bf16.mxu0 0
    %1704 = vmatpush1.bf16.msra.mxu0 0
    %1705 = vmatprep.mubr.bf16.mxu0 0
    %1706 = vmatmul.mubr.bf16.gmra.mrb[0].mxu0 %v1671
    %v1707 = vpop.f32.mrb[0].mxu0
    %v1708 = vadd.f32 %v1645, %v1707
    %v1709 = vpop.f32.mrb[0].mxu0
    %v1710 = vpop.f32.mrb[0].mxu0
    %v1711 = vpop.f32.mrb[0].mxu0
    %1712 = vdwg.mxu0
    %v1714 = vrot.slane %v1708, 1
    %v1717 = vadd.f32 %v1565, %v1708
    %v1718 = vadd.f32 %v1566, %v1714
    %v1721 = vrot.slane %v1718, 7
    %v1722 = vsel %vm1578, %v1721, %v1717
    %vm1724 = vcmask 254976
    %v1725 = vsel %vm1724, %v1722, 0.0
    %1726 = vadd.xlane.f32.xlu0 %v1725
    %v1727 = vpop.xlane.xlu0 %1726
    %v1728 = vmul.f32 %v1727, %v39
    %v1730 = vrot.slane %v1728, 1
    %v1733 = vsub.f32 %v1717, %v1728
    %v1734 = vsub.f32 %v1718, %v1730
    %v1735 = vmul.f32 %v1733, %v1733
    %v1736 = vmul.f32 %v1734, %v1734
    %v1739 = vrot.slane %v1736, 7
    %v1740 = vsel %vm1578, %v1739, %v1735
    %v1742 = vsel %vm1724, %v1740, 0.0
    %1743 = vadd.xlane.f32.xlu0 %v1742
    %v1744 = vpop.xlane.xlu0 %1743
    %v1745 = vmul.f32 %v1744, %v39
    %v1746 = vadd.f32 %v1745, 1e-12
    %v1747 = vrsqrt.pop %v1746
    %v1749 = vrot.slane %v1747, 1
    %v1752 = vmul.f32 %v1733, %v1747
    %v1753 = vmul.f32 %v1734, %v1749
    %v1754 = vlaneseq
    %v1755 = vshrl.u32 %v1754, 7
    %v1756 = vsub.s32 6, %v1755
    %v1757 = vrot.slane %v952, %v1756
    %v1758 = vmul.f32 %v1752, %v1757
    %v1759 = vmul.f32 %v1753, %v1757
    %v1760 = vlaneseq
    %v1761 = vshrl.u32 %v1760, 7
    %v1762 = vsub.s32 7, %v1761
    %v1763 = vrot.slane %v952, %v1762
    %v1764 = vadd.f32 %v1758, %v1763
    %v1765 = vadd.f32 %v1759, %v1763
    %v1766 = vld [vmem:[%s6] sm:$0xff]
    %v1767 = vld [vmem:[%s6 + $0x8] sm:$0xff]
    %v1768 = vld [vmem:[%s6 + $0x10] sm:$0xff]
    %v1769 = vld [vmem:[%s6 + $0x18] sm:$0xff]
    %v1770 = vld [vmem:[%s6 + $0x20] sm:$0x1]
    %v1771 = vlaneseq
    %v1772 = vshrl.u32 %v1771, 7
    %v1773 = vsub.s32 0, %v1772
    %v1774 = vrot.slane %v1770, %v1773
    %v1777 = vrot.slane %v1765, 7
    %v1778 = vsel %vm1578, %v1777, %v1764
    %v1779 = vsel %vm32, %v1778, 0
    %1781 = vmatprep.subr.mxu0 0.0
    %1782 = vmatpush1.msra.mxu0 %v1766
    %1783 = vmatprep.subr.mxu0 0.0
    %1784 = vmatpush1.msra.mxu0 %v1767
    %1785 = vmatprep.subr.mxu0 0.0
    %1786 = vmatpush1.msra.mxu0 %v1768
    %1787 = vmatprep.subr.mxu0 0.0
    %1788 = vmatpush1.msra.mxu0 %v1769
    %1789 = vmatprep.subr.mxu0 0.0
    %1790 = vmatpush1.msra.mxu0 0.0
    %1791 = vmatprep.subr.mxu0 0.0
    %1792 = vmatpush1.msra.mxu0 0.0
    %1793 = vmatprep.subr.mxu0 0.0
    %1794 = vmatpush1.msra.mxu0 0.0
    %1795 = vmatprep.subr.mxu0 0.0
    %1796 = vmatpush1.msra.mxu0 0.0
    %1797 = vmatprep.subr.mxu0 0.0
    %1798 = vmatpush1.msra.mxu0 0.0
    %1799 = vmatprep.subr.mxu0 0.0
    %1800 = vmatpush1.msra.mxu0 0.0
    %1801 = vmatprep.subr.mxu0 0.0
    %1802 = vmatpush1.msra.mxu0 0.0
    %1803 = vmatprep.subr.mxu0 0.0
    %1804 = vmatpush1.msra.mxu0 0.0
    %1805 = vmatprep.subr.mxu0 0.0
    %1806 = vmatpush1.msra.mxu0 0.0
    %1807 = vmatprep.subr.mxu0 0.0
    %1808 = vmatpush1.msra.mxu0 0.0
    %1809 = vmatprep.subr.mxu0 0.0
    %1810 = vmatpush1.msra.mxu0 0.0
    %1811 = vmatprep.subr.mxu0 0.0
    %1812 = vmatpush1.msra.mxu0 0.0
    %1813 = vmatprep.subr.mxu0 0.0
    %1814 = vmatpush1.msra.mxu0 0.0
    %1815 = vmatprep.subr.mxu0 0.0
    %1816 = vmatpush1.msra.mxu0 0.0
    %1817 = vmatprep.subr.mxu0 0.0
    %1818 = vmatpush1.msra.mxu0 0.0
    %1819 = vmatprep.subr.mxu0 0.0
    %1820 = vmatpush1.msra.mxu0 0.0
    %1821 = vmatprep.subr.mxu0 0.0
    %1822 = vmatpush1.msra.mxu0 0.0
    %1823 = vmatprep.subr.mxu0 0.0
    %1824 = vmatpush1.msra.mxu0 0.0
    %1825 = vmatprep.subr.mxu0 0.0
    %1826 = vmatpush1.msra.mxu0 0.0
    %1827 = vmatprep.subr.mxu0 0.0
    %1828 = vmatpush1.msra.mxu0 0.0
    %1829 = vmatprep.subr.mxu0 0.0
    %1830 = vmatpush1.msra.mxu0 0.0
    %1831 = vmatprep.subr.mxu0 0.0
    %1832 = vmatpush1.msra.mxu0 0.0
    %1833 = vmatprep.subr.mxu0 0.0
    %1834 = vmatpush1.msra.mxu0 0.0
    %1835 = vmatprep.subr.mxu0 0.0
    %1836 = vmatpush1.msra.mxu0 0.0
    %1837 = vmatprep.subr.mxu0 0.0
    %1838 = vmatpush1.msra.mxu0 0.0
    %1839 = vmatprep.subr.mxu0 0.0
    %1840 = vmatpush1.msra.mxu0 0.0
    %1841 = vmatprep.subr.mxu0 0.0
    %1842 = vmatpush1.msra.mxu0 0.0
    %1843 = vmatprep.subr.mxu0 0.0
    %1844 = vmatpush1.msra.mxu0 0.0
    %1845 = vmatprep.mubr.f32.mxu0 0.0
    %1846 = vmatmul.mubr.f32.gmra.mrb[0].mxu0 %v1779
    %v1847 = vpop.f32.mrb[0].mxu0
    %v1848 = vadd.f32 %v1774, %v1847
    %v1849 = vpop.f32.mrb[0].mxu0
    %1850 = vdwg.mxu0
    %1851 = vst [vmem:[#allocation2] sm:$0x3] %v1848
    // Predicated region
    $region30: #{bengali_bert_forward.1} parent=1 // pred_check
      _
    $region31: #{bengali_bert_forward.1} parent=1 // pred_check_branch
      %1853 = sbr.rel (0) target = $region33
    $region32: #{bengali_bert_forward.1} parent=1 // pred_region
      %s1855 = ssub.s32 32, 32
      %1856 = vsyncadd [#allocation3], %s1855
      %s1858 = sshll.u32 [#allocation2], 4
      %s1859 = int_to_ptr.vmem [resolvable:$true] %s1858
      %1861 = dma.vmem_to_hbm [thread:$0]  %s1859, 32, %s7, [#allocation3]
    $region33: #{bengali_bert_forward.1} parent=1 // pred_fallthru
      _
    // Predicated region
    $region34: #{bengali_bert_forward.1} parent=1 // pred_check
      _
    $region35: #{bengali_bert_forward.1} parent=1 // pred_check_branch
      %1863 = sbr.rel (0) target = $region37
    $region36: #{bengali_bert_forward.1} parent=1 // pred_region
      %1864 = dma.done [#allocation3], 32
    $region37: #{bengali_bert_forward.1} parent=1 // pred_fallthru
      _
    %1865 = vsyncpa [#allocation3], 1

</llo_original>
